<compile_context>
chip_gen: v7x
topology: tpu7x:2x2x1
jax: 0.10.0
libtpu: 0.0.40
codegen_flags: <defaults>
</compile_context>

<pallas_src>
import numpy as np
import jax
import jax.numpy as jnp
from jax import lax
from jax.experimental import pallas as pl
from jax.experimental.pallas import tpu as pltpu

# ---------------- config (small, consistent with the module) ----------------
BATCH = 2          # args.batch_size
HIS_LEN = 10       # args.his_len
NUM_NODE = 4       # args.num_node
IN_DIM = 8         # args.in_dim
HID_DIM = 32       # args.hid_dim
SNPSTS_LEN = 4     # args.snpsts_len
CHANNELS = 2       # args.channels (HID_DIM % CHANNELS == 0 -> channel cat == HID_DIM)
LN_EPS = 1e-5


def generate_checkpoints(snpsts_len, his_len):
    mark = snpsts_len
    cps = []
    while mark < his_len:
        cps.append(mark)
        mark += snpsts_len - 1
    if cps[-1] != his_len:
        cps.append(his_len)
    return tuple(cps)


CHECKPOINTS = generate_checkpoints(SNPSTS_LEN, HIS_LEN)   # (4, 7, 10)
N_ROUNDS = len(CHECKPOINTS)
LEFTS = (0,) + CHECKPOINTS[:-1]

SN = SNPSTS_LEN * NUM_NODE      # 16 rows per batch of a round window
TN = HIS_LEN * NUM_NODE         # 40 rows per batch of the full history
BN = BATCH * NUM_NODE           # 8  rows of one field's per-round result

# hc working-slab row layout: [ h (80) | carries adj,pearson (16) | const tail (8) ]
H_ROWS = BATCH * TN             # 80
CARRY_OFF = H_ROWS              # 80
TAIL_OFF = H_ROWS + 2 * BN      # 96 : row 96 = in_b, row 97 = ones, 98:104 = 0
HC_ROWS = TAIL_OFF + 8          # 104
R_ROWS = 4 * BN                 # 32 round-result rows: [prop_adj|prop_pear|res_adj|res_pear]

# misc constants operand row layout (lane width = HID_DIM)
MISC_W_ADJ = 0                  # rows  0:32  GCN weight (adj, channel-concatenated)
MISC_W_PEAR = HID_DIM           # rows 32:64  GCN weight (pearson)
MISC_IN_W = 2 * HID_DIM         # rows 64:72  in_linear weight (F, H)
MISC_TAIL = 2 * HID_DIM + IN_DIM  # rows 72:80 hc constant tail init
MISC_ROWS = MISC_TAIL + 8       # 80

_VMEM = pl.BlockSpec(memory_space=pltpu.MemorySpace.VMEM)


# ------------------------------ fused kernel --------------------------------
def _slab_layer_norm(s):
    # LayerNorm([B, N, H], elementwise_affine=False): normalize over the whole
    # (B*N, H) slab.  One-pass statistics (E[x^2] - mu^2) to shorten the
    # serial dependency chain feeding the next round's carry.
    mu = jnp.mean(s)
    ms = jnp.mean(s * s)
    var = ms - mu * mu
    return (s - mu) * lax.rsqrt(var + LN_EPS)


def _fused_forward_kernel(x_ref, ac_ref, misc_ref, out_ref, hc_ref):
    # x:    (80, 8)    flattened inputs, rows ordered (batch, time, node)
    # ac:   (96, 104)  per-round combined operator (3 rounds x 32 rows), acting
    #                  on the hc slab; biases folded into columns 96/97
    # misc: (80, 32)   [w_adj | w_pearson | in_w | hc tail init]
    # out:  (16, 32)   rows 0:8 = adj LayerNorm result, 8:16 = pearson
    # hc:   (104, 32)  persistent working slab (scratch)

    # hoisted constant loads (outside the unrolled round loop)
    in_w = misc_ref[MISC_IN_W:MISC_IN_W + IN_DIM, :]          # (8, 32)
    w_adj = misc_ref[MISC_W_ADJ:MISC_W_ADJ + HID_DIM, :]      # (32, 32)
    w_pear = misc_ref[MISC_W_PEAR:MISC_W_PEAR + HID_DIM, :]   # (32, 32)

    # h (input linear WITHOUT bias — bias folded into ac column 96), zeroed
    # carry slot, constant tail [in_b ; ones ; 0].
    hc_ref[0:H_ROWS, :] = jnp.dot(
        x_ref[...], in_w, preferred_element_type=jnp.float32)
    hc_ref[CARRY_OFF:TAIL_OFF, :] = jnp.zeros((2 * BN, HID_DIM), jnp.float32)
    hc_ref[TAIL_OFF:HC_ROWS, :] = misc_ref[MISC_TAIL:MISC_TAIL + 8, :]

    for idx in range(N_ROUNDS):
        # One matmul = GCN propagation (fwd+bwd supports, last-N rows) AND the
        # Conv1d(k=1) residual, for BOTH fields and BOTH batches at once,
        # including the round's row selection (new time slices + carried
        # snapshot) and both bias terms.
        # TODO(synk): the original GCN class (DGL message passing on batched
        # graphs) is not defined in the source; this is a dense 2-support
        # graph-convolution stand-in with the same data layout.
        ac = ac_ref[idx * R_ROWS:(idx + 1) * R_ROWS, :]               # (32, 104)
        r = jnp.dot(ac, hc_ref[...], preferred_element_type=jnp.float32)  # (32, 32)

        prop_a = r[0:BN, :]
        prop_p = r[BN:2 * BN, :]
        res_a = r[2 * BN:3 * BN, :]
        res_p = r[3 * BN:4 * BN, :]

        # per-channel relu projections, pre-concatenated into one (H, H) weight
        # (exact: relu distributes over the channel concat).
        s_a = jax.nn.relu(jnp.dot(prop_a, w_adj,
                                  preferred_element_type=jnp.float32)) + res_a
        s_p = jax.nn.relu(jnp.dot(prop_p, w_pear,
                                  preferred_element_type=jnp.float32)) + res_p

        ln_a = _slab_layer_norm(s_a)
        ln_p = _slab_layer_norm(s_p)
        carry = jnp.concatenate([ln_a, ln_p], axis=0)                 # (16, 32)

        if idx + 1 < N_ROUNDS:
            hc_ref[CARRY_OFF:TAIL_OFF, :] = carry                     # feed next round
        else:
            out_ref[...] = carry                                      # one dense store


# ----------------------- one-time host-side constants ------------------------
def _field_raw(params, graphs, field):
    a_fwd = np.asarray(graphs[field]["fwd"], np.float32)
    a_bwd = np.asarray(graphs[field]["bwd"], np.float32)
    a_comb = a_fwd[-NUM_NODE:, :] + a_bwd[-NUM_NODE:, :]              # (N, SN)
    res_w = np.asarray(params[field]["res_w"], np.float32)            # (N, SN)
    res_b = np.asarray(params[field]["res_b"], np.float32)            # (N,)
    gcn_w = np.asarray(params[field]["gcn_w"], np.float32)            # (C, H, H/C)
    wcat = np.concatenate([gcn_w[c] for c in range(CHANNELS)], axis=-1)  # (H, H)
    return a_comb, res_w, res_b, wcat


def prepare_constants(params, graphs):
    """Build the per-round combined operators + misc constants ONCE (numpy)."""
    in_w = np.asarray(params["in_w"], np.float32)                     # (F, H)
    in_b = np.asarray(params["in_b"], np.float32)                     # (H,)
    fields = [_field_raw(params, graphs, f) for f in ("adj", "pearson")]

    ac = np.zeros((N_ROUNDS * R_ROWS, HC_ROWS), np.float32)
    for idx in range(N_ROUNDS):
        left = LEFTS[idx]
        blk = ac[idx * R_ROWS:(idx + 1) * R_ROWS]                     # view
        for f_i, (a_comb, res_w, _, _) in enumerate(fields):
            for b in range(BATCH):
                for j in range(SN):
                    if idx == 0:
                        t, n_src = divmod(j, NUM_NODE)
                        col = b * TN + t * NUM_NODE + n_src
                    elif j < NUM_NODE:
                        # carried snapshot (previous round's LN output)
                        col = CARRY_OFF + f_i * BN + b * NUM_NODE + j
                    else:
                        t_off, n_src = divmod(j - NUM_NODE, NUM_NODE)
                        col = b * TN + (left + t_off) * NUM_NODE + n_src
                    for n_out in range(NUM_NODE):
                        row_prop = f_i * BN + b * NUM_NODE + n_out
                        row_res = 2 * BN + f_i * BN + b * NUM_NODE + n_out
                        blk[row_prop, col] += a_comb[n_out, j]
                        blk[row_res, col] += res_w[n_out, j]
        # fold in_linear bias: hc row TAIL_OFF holds in_b (lane vector), its
        # coefficient is the row-sum of the h-columns of the operator.
        blk[:, TAIL_OFF] = blk[:, :H_ROWS].sum(axis=1)
        # fold conv1x1 bias: hc row TAIL_OFF+1 is all-ones.
        for f_i, fld in enumerate(fields):
            res_b = fld[2]
            for b in range(BATCH):
                for n_out in range(NUM_NODE):
                    blk[2 * BN + f_i * BN + b * NUM_NODE + n_out,
                        TAIL_OFF + 1] = res_b[n_out]

    misc = np.zeros((MISC_ROWS, HID_DIM), np.float32)
    misc[MISC_W_ADJ:MISC_W_ADJ + HID_DIM] = fields[0][3]
    misc[MISC_W_PEAR:MISC_W_PEAR + HID_DIM] = fields[1][3]
    misc[MISC_IN_W:MISC_IN_W + IN_DIM] = in_w
    misc[MISC_TAIL] = in_b
    misc[MISC_TAIL + 1] = 1.0
    return jnp.asarray(ac), jnp.asarray(misc)


# -------------------------------- forward -----------------------------------
_FLOPS = (2 * H_ROWS * IN_DIM * HID_DIM
          + N_ROUNDS * (2 * R_ROWS * HC_ROWS * HID_DIM
                        + 2 * 2 * BN * HID_DIM * HID_DIM))
_BYTES = 4 * (H_ROWS * IN_DIM + N_ROUNDS * R_ROWS * HC_ROWS
              + MISC_ROWS * HID_DIM + 2 * BN * HID_DIM)
_COST = pl.CostEstimate(flops=int(_FLOPS), transcendentals=2 * N_ROUNDS,
                        bytes_accessed=int(_BYTES))


@jax.jit
def forward(inputs, ac, misc):
    x_flat = inputs.reshape(BATCH * HIS_LEN * NUM_NODE, IN_DIM)
    out = pl.pallas_call(
        _fused_forward_kernel,
        out_shape=jax.ShapeDtypeStruct((2 * BN, HID_DIM), jnp.float32),
        in_specs=[_VMEM, _VMEM, _VMEM],
        out_specs=_VMEM,
        scratch_shapes=[pltpu.VMEM((HC_ROWS, HID_DIM), jnp.float32)],
        cost_estimate=_COST,
    )(x_flat, ac, misc)
    out = out.reshape(2, BATCH, 1, NUM_NODE, HID_DIM)
    return out[0], out[1]


# ----------------------- pure-JAX reference (checking) -----------------------
def reference_forward(params, graphs, inputs):
    h = jnp.einsum("btnf,fh->btnh", inputs, params["in_w"]) + params["in_b"]
    outs = {}
    for field in ("adj", "pearson"):
        a_comb = (graphs[field]["fwd"][-NUM_NODE:, :]
                  + graphs[field]["bwd"][-NUM_NODE:, :])
        res_w = params[field]["res_w"]
        res_b = params[field]["res_b"]
        wcat = jnp.concatenate(
            [params[field]["gcn_w"][c] for c in range(CHANNELS)], axis=-1)
        carry = None
        left = 0
        for idx, right in enumerate(CHECKPOINTS):
            slab = h[:, left:right]
            if idx != 0:
                slab = jnp.concatenate([carry, slab], axis=1)
            feat = slab.reshape(BATCH, SN, HID_DIM)
            resid = jnp.einsum("ns,bsh->bnh", res_w, feat) + res_b[None, :, None]
            prop = jnp.einsum("ns,bsh->bnh", a_comb, feat)
            conv = jax.nn.relu(jnp.einsum("bnh,hk->bnk", prop, wcat))
            s = conv + resid
            mu = jnp.mean(s)
            var = jnp.mean(jnp.square(s - mu))
            carry = ((s - mu) * lax.rsqrt(var + LN_EPS))[:, None]     # (B,1,N,H)
            left = right
        outs[field] = carry
    return outs["adj"], outs["pearson"]


# ----------------------------- graphs / params -------------------------------
def combine_adj_forward(adj, s):
    n = adj.shape[0]
    rst = np.zeros((n * s, n * s), np.float32)
    off = 0
    for v in range(s):
        if v == s - 1:
            rst[-n:, -n:] = adj
        else:
            unit = np.concatenate([adj, np.eye(n, dtype=np.float32)], axis=-1)
            rst[off:off + n, off:off + 2 * n] = unit
        off += n
    return rst


def combine_adj_backward(adj, s):
    n = adj.shape[0]
    rst = np.zeros((n * s, n * s), np.float32)
    for v in range(s):
        rst[v * n:(v + 1) * n, v * n:(v + 1) * n] = adj
    return rst


def build_graphs():
    # TODO(synk): original code loads a pickled pearson matrix and builds
    # weighted DGL graphs; replaced by deterministic dense matrices here.
    adj = np.eye(NUM_NODE, dtype=np.float32)
    for i in range(NUM_NODE):
        adj[i, (i + 1) % NUM_NODE] = 1.0
    pearson = np.eye(NUM_NODE, dtype=np.float32)
    for i in range(NUM_NODE):
        pearson[i, (i + 2) % NUM_NODE] = 0.5
    return {
        "adj": {
            "fwd": jnp.asarray(combine_adj_forward(adj, SNPSTS_LEN)),
            "bwd": jnp.asarray(combine_adj_backward(adj, SNPSTS_LEN)),
        },
        "pearson": {
            "fwd": jnp.asarray(combine_adj_forward(pearson, SNPSTS_LEN)),
            "bwd": jnp.asarray(combine_adj_backward(pearson, SNPSTS_LEN)),
        },
    }


def init_params(key):
    ks = jax.random.split(key, 10)
    scale = 0.1
    return {
        "in_w": scale * jax.random.normal(ks[0], (IN_DIM, HID_DIM), jnp.float32),
        "in_b": scale * jax.random.normal(ks[1], (HID_DIM,), jnp.float32),
        "adj": {
            "res_w": scale * jax.random.normal(
                ks[2], (NUM_NODE, SNPSTS_LEN * NUM_NODE), jnp.float32),
            "res_b": scale * jax.random.normal(ks[3], (NUM_NODE,), jnp.float32),
            "gcn_w": scale * jax.random.normal(
                ks[4], (CHANNELS, HID_DIM, HID_DIM // CHANNELS), jnp.float32),
        },
        "pearson": {
            "res_w": scale * jax.random.normal(
                ks[5], (NUM_NODE, SNPSTS_LEN * NUM_NODE), jnp.float32),
            "res_b": scale * jax.random.normal(ks[6], (NUM_NODE,), jnp.float32),
            "gcn_w": scale * jax.random.normal(
                ks[7], (CHANNELS, HID_DIM, HID_DIM // CHANNELS), jnp.float32),
        },
    }


if __name__ == "__main__":
    key = jax.random.PRNGKey(0)
    k_in, k_par = jax.random.split(key)
    inputs = jax.random.normal(
        k_in, (BATCH, HIS_LEN, NUM_NODE, IN_DIM), jnp.float32)
    params = init_params(k_par)
    graphs = build_graphs()

    # One-time constant construction (hoisted out of the per-call path).
    ac_const, misc_const = prepare_constants(params, graphs)

    out_adj, out_pearson = forward(inputs, ac_const, misc_const)
    jax.block_until_ready((out_adj, out_pearson))

    assert out_adj.shape == (BATCH, 1, NUM_NODE, HID_DIM)
    assert out_pearson.shape == (BATCH, 1, NUM_NODE, HID_DIM)

    ref_adj, ref_pearson = reference_forward(params, graphs, inputs)
    np.testing.assert_allclose(np.asarray(out_adj), np.asarray(ref_adj),
                               atol=5e-4, rtol=5e-4)
    np.testing.assert_allclose(np.asarray(out_pearson), np.asarray(ref_pearson),
                               atol=5e-4, rtol=5e-4)
    print("KERNEL_OK")
</pallas_src>

<mosaic_0001>
module attributes {stable_mosaic.version = 11 : i64} {
  func.func @_fused_forward_kernel(%arg0: memref<80x8xf32, #tpu.memory_space<vmem>>, %arg1: memref<96x104xf32, #tpu.memory_space<vmem>>, %arg2: memref<80x32xf32, #tpu.memory_space<vmem>>, %arg3: memref<16x32xf32, #tpu.memory_space<vmem>>, %arg4: memref<104x32xf32, #tpu.memory_space<vmem>>) attributes {dimension_semantics = [], scalar_prefetch = 0 : i64, scratch_operands = 1 : i64, tpu.core_type = #tpu.core_type<tc>} {
    %c64 = arith.constant 64 : index
    %c0 = arith.constant 0 : index
    %0 = vector.load %arg2[%c64, %c0] : memref<80x32xf32, #tpu.memory_space<vmem>>, vector<8x32xf32>
    %c0_0 = arith.constant 0 : index
    %c0_1 = arith.constant 0 : index
    %1 = vector.load %arg2[%c0_0, %c0_1] : memref<80x32xf32, #tpu.memory_space<vmem>>, vector<32x32xf32>
    %c32 = arith.constant 32 : index
    %c0_2 = arith.constant 0 : index
    %2 = vector.load %arg2[%c32, %c0_2] : memref<80x32xf32, #tpu.memory_space<vmem>>, vector<32x32xf32>
    %c0_3 = arith.constant 0 : index
    %c0_4 = arith.constant 0 : index
    %3 = vector.load %arg0[%c0_3, %c0_4] : memref<80x8xf32, #tpu.memory_space<vmem>>, vector<80x8xf32>
    %cst = arith.constant dense<0.000000e+00> : vector<80x32xf32>
    %4 = tpu.matmul %3, %0, %cst {dimension_numbers = #tpu.dot_dimension_numbers<[1], [0], [0], [1], [0, 0, 1, 1], [], []>} : vector<80x8xf32>, vector<8x32xf32>, vector<80x32xf32> -> vector<80x32xf32>
    %c0_5 = arith.constant 0 : index
    %c0_6 = arith.constant 0 : index
    %5 = vector.load %arg4[%c0_5, %c0_6] : memref<104x32xf32, #tpu.memory_space<vmem>>, vector<80x32xf32>
    tpu.vector_store %arg4[%c0_5, %c0_6], %4 {strides = array<i32>} : memref<104x32xf32, #tpu.memory_space<vmem>>, vector<80x32xf32>,
    %cst_7 = arith.constant 0.000000e+00 : f32
    %6 = vector.broadcast %cst_7 : f32 to vector<16x32xf32>
    %c80 = arith.constant 80 : index
    %c0_8 = arith.constant 0 : index
    %7 = vector.load %arg4[%c80, %c0_8] : memref<104x32xf32, #tpu.memory_space<vmem>>, vector<16x32xf32>
    tpu.vector_store %arg4[%c80, %c0_8], %6 {strides = array<i32>} : memref<104x32xf32, #tpu.memory_space<vmem>>, vector<16x32xf32>,
    %c72 = arith.constant 72 : index
    %c0_9 = arith.constant 0 : index
    %8 = vector.load %arg2[%c72, %c0_9] : memref<80x32xf32, #tpu.memory_space<vmem>>, vector<8x32xf32>
    %c96 = arith.constant 96 : index
    %c0_10 = arith.constant 0 : index
    %9 = vector.load %arg4[%c96, %c0_10] : memref<104x32xf32, #tpu.memory_space<vmem>>, vector<8x32xf32>
    tpu.vector_store %arg4[%c96, %c0_10], %8 {strides = array<i32>} : memref<104x32xf32, #tpu.memory_space<vmem>>, vector<8x32xf32>,
    %c0_11 = arith.constant 0 : index
    %c0_12 = arith.constant 0 : index
    %10 = vector.load %arg1[%c0_11, %c0_12] : memref<96x104xf32, #tpu.memory_space<vmem>>, vector<32x104xf32>
    %c0_13 = arith.constant 0 : index
    %c0_14 = arith.constant 0 : index
    %11 = vector.load %arg4[%c0_13, %c0_14] : memref<104x32xf32, #tpu.memory_space<vmem>>, vector<104x32xf32>
    %cst_15 = arith.constant dense<0.000000e+00> : vector<32x32xf32>
    %12 = tpu.matmul %10, %11, %cst_15 {dimension_numbers = #tpu.dot_dimension_numbers<[1], [0], [0], [1], [0, 0, 1, 1], [], []>} : vector<32x104xf32>, vector<104x32xf32>, vector<32x32xf32> -> vector<32x32xf32>
    %13 = vector.extract_strided_slice %12 {offsets = [0, 0], sizes = [8, 32], strides = [1, 1]} : vector<32x32xf32> to vector<8x32xf32>
    %14 = vector.extract_strided_slice %12 {offsets = [8, 0], sizes = [8, 32], strides = [1, 1]} : vector<32x32xf32> to vector<8x32xf32>
    %15 = vector.extract_strided_slice %12 {offsets = [16, 0], sizes = [8, 32], strides = [1, 1]} : vector<32x32xf32> to vector<8x32xf32>
    %16 = vector.extract_strided_slice %12 {offsets = [24, 0], sizes = [8, 32], strides = [1, 1]} : vector<32x32xf32> to vector<8x32xf32>
    %cst_16 = arith.constant dense<0.000000e+00> : vector<8x32xf32>
    %17 = tpu.matmul %13, %1, %cst_16 {dimension_numbers = #tpu.dot_dimension_numbers<[1], [0], [0], [1], [0, 0, 1, 1], [], []>} : vector<8x32xf32>, vector<32x32xf32>, vector<8x32xf32> -> vector<8x32xf32>
    %cst_17 = arith.constant 0.000000e+00 : f32
    %18 = vector.broadcast %cst_17 : f32 to vector<8x32xf32>
    %19 = arith.maximumf %17, %18 : vector<8x32xf32>
    %20 = arith.addf %19, %15 : vector<8x32xf32>
    %cst_18 = arith.constant dense<0.000000e+00> : vector<8x32xf32>
    %21 = tpu.matmul %14, %2, %cst_18 {dimension_numbers = #tpu.dot_dimension_numbers<[1], [0], [0], [1], [0, 0, 1, 1], [], []>} : vector<8x32xf32>, vector<32x32xf32>, vector<8x32xf32> -> vector<8x32xf32>
    %cst_19 = arith.constant 0.000000e+00 : f32
    %22 = vector.broadcast %cst_19 : f32 to vector<8x32xf32>
    %23 = arith.maximumf %21, %22 : vector<8x32xf32>
    %24 = arith.addf %23, %16 : vector<8x32xf32>
    %25 = vector.shape_cast %20 : vector<8x32xf32> to vector<1x8x32xf32>
    %cst_20 = arith.constant dense<0.000000e+00> : vector<1xf32>
    %26 = vector.multi_reduction <add>, %25, %cst_20 [1, 2] : vector<1x8x32xf32> to vector<1xf32>
    %27 = vector.shape_cast %26 : vector<1xf32> to vector<1x1x1xf32>
    %28 = vector.extract %27[0, 0, 0] : f32 from vector<1x1x1xf32>
    %cst_21 = arith.constant 2.560000e+02 : f32
    %29 = arith.divf %28, %cst_21 : f32
    %30 = arith.mulf %20, %20 : vector<8x32xf32>
    %31 = vector.shape_cast %30 : vector<8x32xf32> to vector<1x8x32xf32>
    %cst_22 = arith.constant dense<0.000000e+00> : vector<1xf32>
    %32 = vector.multi_reduction <add>, %31, %cst_22 [1, 2] : vector<1x8x32xf32> to vector<1xf32>
    %33 = vector.shape_cast %32 : vector<1xf32> to vector<1x1x1xf32>
    %34 = vector.extract %33[0, 0, 0] : f32 from vector<1x1x1xf32>
    %cst_23 = arith.constant 2.560000e+02 : f32
    %35 = arith.divf %34, %cst_23 : f32
    %36 = arith.mulf %29, %29 : f32
    %37 = arith.subf %35, %36 : f32
    %38 = vector.broadcast %29 : f32 to vector<8x32xf32>
    %39 = arith.subf %20, %38 : vector<8x32xf32>
    %cst_24 = arith.constant 9.99999974E-6 : f32
    %40 = arith.addf %37, %cst_24 : f32
    %41 = math.rsqrt %40 : f32
    %42 = vector.broadcast %41 : f32 to vector<8x32xf32>
    %43 = arith.mulf %39, %42 : vector<8x32xf32>
    %44 = vector.shape_cast %24 : vector<8x32xf32> to vector<1x8x32xf32>
    %cst_25 = arith.constant dense<0.000000e+00> : vector<1xf32>
    %45 = vector.multi_reduction <add>, %44, %cst_25 [1, 2] : vector<1x8x32xf32> to vector<1xf32>
    %46 = vector.shape_cast %45 : vector<1xf32> to vector<1x1x1xf32>
    %47 = vector.extract %46[0, 0, 0] : f32 from vector<1x1x1xf32>
    %cst_26 = arith.constant 2.560000e+02 : f32
    %48 = arith.divf %47, %cst_26 : f32
    %49 = arith.mulf %24, %24 : vector<8x32xf32>
    %50 = vector.shape_cast %49 : vector<8x32xf32> to vector<1x8x32xf32>
    %cst_27 = arith.constant dense<0.000000e+00> : vector<1xf32>
    %51 = vector.multi_reduction <add>, %50, %cst_27 [1, 2] : vector<1x8x32xf32> to vector<1xf32>
    %52 = vector.shape_cast %51 : vector<1xf32> to vector<1x1x1xf32>
    %53 = vector.extract %52[0, 0, 0] : f32 from vector<1x1x1xf32>
    %cst_28 = arith.constant 2.560000e+02 : f32
    %54 = arith.divf %53, %cst_28 : f32
    %55 = arith.mulf %48, %48 : f32
    %56 = arith.subf %54, %55 : f32
    %57 = vector.broadcast %48 : f32 to vector<8x32xf32>
    %58 = arith.subf %24, %57 : vector<8x32xf32>
    %cst_29 = arith.constant 9.99999974E-6 : f32
    %59 = arith.addf %56, %cst_29 : f32
    %60 = math.rsqrt %59 : f32
    %61 = vector.broadcast %60 : f32 to vector<8x32xf32>
    %62 = arith.mulf %58, %61 : vector<8x32xf32>
    %63 = tpu.concatenate %43, %62 in 0 : vector<8x32xf32>, vector<8x32xf32> -> vector<16x32xf32>
    %c80_30 = arith.constant 80 : index
    %c0_31 = arith.constant 0 : index
    %64 = vector.load %arg4[%c80_30, %c0_31] : memref<104x32xf32, #tpu.memory_space<vmem>>, vector<16x32xf32>
    tpu.vector_store %arg4[%c80_30, %c0_31], %63 {strides = array<i32>} : memref<104x32xf32, #tpu.memory_space<vmem>>, vector<16x32xf32>,
    %c32_32 = arith.constant 32 : index
    %c0_33 = arith.constant 0 : index
    %65 = vector.load %arg1[%c32_32, %c0_33] : memref<96x104xf32, #tpu.memory_space<vmem>>, vector<32x104xf32>
    %c0_34 = arith.constant 0 : index
    %c0_35 = arith.constant 0 : index
    %66 = vector.load %arg4[%c0_34, %c0_35] : memref<104x32xf32, #tpu.memory_space<vmem>>, vector<104x32xf32>
    %cst_36 = arith.constant dense<0.000000e+00> : vector<32x32xf32>
    %67 = tpu.matmul %65, %66, %cst_36 {dimension_numbers = #tpu.dot_dimension_numbers<[1], [0], [0], [1], [0, 0, 1, 1], [], []>} : vector<32x104xf32>, vector<104x32xf32>, vector<32x32xf32> -> vector<32x32xf32>
    %68 = vector.extract_strided_slice %67 {offsets = [0, 0], sizes = [8, 32], strides = [1, 1]} : vector<32x32xf32> to vector<8x32xf32>
    %69 = vector.extract_strided_slice %67 {offsets = [8, 0], sizes = [8, 32], strides = [1, 1]} : vector<32x32xf32> to vector<8x32xf32>
    %70 = vector.extract_strided_slice %67 {offsets = [16, 0], sizes = [8, 32], strides = [1, 1]} : vector<32x32xf32> to vector<8x32xf32>
    %71 = vector.extract_strided_slice %67 {offsets = [24, 0], sizes = [8, 32], strides = [1, 1]} : vector<32x32xf32> to vector<8x32xf32>
    %cst_37 = arith.constant dense<0.000000e+00> : vector<8x32xf32>
    %72 = tpu.matmul %68, %1, %cst_37 {dimension_numbers = #tpu.dot_dimension_numbers<[1], [0], [0], [1], [0, 0, 1, 1], [], []>} : vector<8x32xf32>, vector<32x32xf32>, vector<8x32xf32> -> vector<8x32xf32>
    %cst_38 = arith.constant 0.000000e+00 : f32
    %73 = vector.broadcast %cst_38 : f32 to vector<8x32xf32>
    %74 = arith.maximumf %72, %73 : vector<8x32xf32>
    %75 = arith.addf %74, %70 : vector<8x32xf32>
    %cst_39 = arith.constant dense<0.000000e+00> : vector<8x32xf32>
    %76 = tpu.matmul %69, %2, %cst_39 {dimension_numbers = #tpu.dot_dimension_numbers<[1], [0], [0], [1], [0, 0, 1, 1], [], []>} : vector<8x32xf32>, vector<32x32xf32>, vector<8x32xf32> -> vector<8x32xf32>
    %cst_40 = arith.constant 0.000000e+00 : f32
    %77 = vector.broadcast %cst_40 : f32 to vector<8x32xf32>
    %78 = arith.maximumf %76, %77 : vector<8x32xf32>
    %79 = arith.addf %78, %71 : vector<8x32xf32>
    %80 = vector.shape_cast %75 : vector<8x32xf32> to vector<1x8x32xf32>
    %cst_41 = arith.constant dense<0.000000e+00> : vector<1xf32>
    %81 = vector.multi_reduction <add>, %80, %cst_41 [1, 2] : vector<1x8x32xf32> to vector<1xf32>
    %82 = vector.shape_cast %81 : vector<1xf32> to vector<1x1x1xf32>
    %83 = vector.extract %82[0, 0, 0] : f32 from vector<1x1x1xf32>
    %cst_42 = arith.constant 2.560000e+02 : f32
    %84 = arith.divf %83, %cst_42 : f32
    %85 = arith.mulf %75, %75 : vector<8x32xf32>
    %86 = vector.shape_cast %85 : vector<8x32xf32> to vector<1x8x32xf32>
    %cst_43 = arith.constant dense<0.000000e+00> : vector<1xf32>
    %87 = vector.multi_reduction <add>, %86, %cst_43 [1, 2] : vector<1x8x32xf32> to vector<1xf32>
    %88 = vector.shape_cast %87 : vector<1xf32> to vector<1x1x1xf32>
    %89 = vector.extract %88[0, 0, 0] : f32 from vector<1x1x1xf32>
    %cst_44 = arith.constant 2.560000e+02 : f32
    %90 = arith.divf %89, %cst_44 : f32
    %91 = arith.mulf %84, %84 : f32
    %92 = arith.subf %90, %91 : f32
    %93 = vector.broadcast %84 : f32 to vector<8x32xf32>
    %94 = arith.subf %75, %93 : vector<8x32xf32>
    %cst_45 = arith.constant 9.99999974E-6 : f32
    %95 = arith.addf %92, %cst_45 : f32
    %96 = math.rsqrt %95 : f32
    %97 = vector.broadcast %96 : f32 to vector<8x32xf32>
    %98 = arith.mulf %94, %97 : vector<8x32xf32>
    %99 = vector.shape_cast %79 : vector<8x32xf32> to vector<1x8x32xf32>
    %cst_46 = arith.constant dense<0.000000e+00> : vector<1xf32>
    %100 = vector.multi_reduction <add>, %99, %cst_46 [1, 2] : vector<1x8x32xf32> to vector<1xf32>
    %101 = vector.shape_cast %100 : vector<1xf32> to vector<1x1x1xf32>
    %102 = vector.extract %101[0, 0, 0] : f32 from vector<1x1x1xf32>
    %cst_47 = arith.constant 2.560000e+02 : f32
    %103 = arith.divf %102, %cst_47 : f32
    %104 = arith.mulf %79, %79 : vector<8x32xf32>
    %105 = vector.shape_cast %104 : vector<8x32xf32> to vector<1x8x32xf32>
    %cst_48 = arith.constant dense<0.000000e+00> : vector<1xf32>
    %106 = vector.multi_reduction <add>, %105, %cst_48 [1, 2] : vector<1x8x32xf32> to vector<1xf32>
    %107 = vector.shape_cast %106 : vector<1xf32> to vector<1x1x1xf32>
    %108 = vector.extract %107[0, 0, 0] : f32 from vector<1x1x1xf32>
    %cst_49 = arith.constant 2.560000e+02 : f32
    %109 = arith.divf %108, %cst_49 : f32
    %110 = arith.mulf %103, %103 : f32
    %111 = arith.subf %109, %110 : f32
    %112 = vector.broadcast %103 : f32 to vector<8x32xf32>
    %113 = arith.subf %79, %112 : vector<8x32xf32>
    %cst_50 = arith.constant 9.99999974E-6 : f32
    %114 = arith.addf %111, %cst_50 : f32
    %115 = math.rsqrt %114 : f32
    %116 = vector.broadcast %115 : f32 to vector<8x32xf32>
    %117 = arith.mulf %113, %116 : vector<8x32xf32>
    %118 = tpu.concatenate %98, %117 in 0 : vector<8x32xf32>, vector<8x32xf32> -> vector<16x32xf32>
    %c80_51 = arith.constant 80 : index
    %c0_52 = arith.constant 0 : index
    %119 = vector.load %arg4[%c80_51, %c0_52] : memref<104x32xf32, #tpu.memory_space<vmem>>, vector<16x32xf32>
    tpu.vector_store %arg4[%c80_51, %c0_52], %118 {strides = array<i32>} : memref<104x32xf32, #tpu.memory_space<vmem>>, vector<16x32xf32>,
    %c64_53 = arith.constant 64 : index
    %c0_54 = arith.constant 0 : index
    %120 = vector.load %arg1[%c64_53, %c0_54] : memref<96x104xf32, #tpu.memory_space<vmem>>, vector<32x104xf32>
    %c0_55 = arith.constant 0 : index
    %c0_56 = arith.constant 0 : index
    %121 = vector.load %arg4[%c0_55, %c0_56] : memref<104x32xf32, #tpu.memory_space<vmem>>, vector<104x32xf32>
    %cst_57 = arith.constant dense<0.000000e+00> : vector<32x32xf32>
    %122 = tpu.matmul %120, %121, %cst_57 {dimension_numbers = #tpu.dot_dimension_numbers<[1], [0], [0], [1], [0, 0, 1, 1], [], []>} : vector<32x104xf32>, vector<104x32xf32>, vector<32x32xf32> -> vector<32x32xf32>
    %123 = vector.extract_strided_slice %122 {offsets = [0, 0], sizes = [8, 32], strides = [1, 1]} : vector<32x32xf32> to vector<8x32xf32>
    %124 = vector.extract_strided_slice %122 {offsets = [8, 0], sizes = [8, 32], strides = [1, 1]} : vector<32x32xf32> to vector<8x32xf32>
    %125 = vector.extract_strided_slice %122 {offsets = [16, 0], sizes = [8, 32], strides = [1, 1]} : vector<32x32xf32> to vector<8x32xf32>
    %126 = vector.extract_strided_slice %122 {offsets = [24, 0], sizes = [8, 32], strides = [1, 1]} : vector<32x32xf32> to vector<8x32xf32>
    %cst_58 = arith.constant dense<0.000000e+00> : vector<8x32xf32>
    %127 = tpu.matmul %123, %1, %cst_58 {dimension_numbers = #tpu.dot_dimension_numbers<[1], [0], [0], [1], [0, 0, 1, 1], [], []>} : vector<8x32xf32>, vector<32x32xf32>, vector<8x32xf32> -> vector<8x32xf32>
    %cst_59 = arith.constant 0.000000e+00 : f32
    %128 = vector.broadcast %cst_59 : f32 to vector<8x32xf32>
    %129 = arith.maximumf %127, %128 : vector<8x32xf32>
    %130 = arith.addf %129, %125 : vector<8x32xf32>
    %cst_60 = arith.constant dense<0.000000e+00> : vector<8x32xf32>
    %131 = tpu.matmul %124, %2, %cst_60 {dimension_numbers = #tpu.dot_dimension_numbers<[1], [0], [0], [1], [0, 0, 1, 1], [], []>} : vector<8x32xf32>, vector<32x32xf32>, vector<8x32xf32> -> vector<8x32xf32>
    %cst_61 = arith.constant 0.000000e+00 : f32
    %132 = vector.broadcast %cst_61 : f32 to vector<8x32xf32>
    %133 = arith.maximumf %131, %132 : vector<8x32xf32>
    %134 = arith.addf %133, %126 : vector<8x32xf32>
    %135 = vector.shape_cast %130 : vector<8x32xf32> to vector<1x8x32xf32>
    %cst_62 = arith.constant dense<0.000000e+00> : vector<1xf32>
    %136 = vector.multi_reduction <add>, %135, %cst_62 [1, 2] : vector<1x8x32xf32> to vector<1xf32>
    %137 = vector.shape_cast %136 : vector<1xf32> to vector<1x1x1xf32>
    %138 = vector.extract %137[0, 0, 0] : f32 from vector<1x1x1xf32>
    %cst_63 = arith.constant 2.560000e+02 : f32
    %139 = arith.divf %138, %cst_63 : f32
    %140 = arith.mulf %130, %130 : vector<8x32xf32>
    %141 = vector.shape_cast %140 : vector<8x32xf32> to vector<1x8x32xf32>
    %cst_64 = arith.constant dense<0.000000e+00> : vector<1xf32>
    %142 = vector.multi_reduction <add>, %141, %cst_64 [1, 2] : vector<1x8x32xf32> to vector<1xf32>
    %143 = vector.shape_cast %142 : vector<1xf32> to vector<1x1x1xf32>
    %144 = vector.extract %143[0, 0, 0] : f32 from vector<1x1x1xf32>
    %cst_65 = arith.constant 2.560000e+02 : f32
    %145 = arith.divf %144, %cst_65 : f32
    %146 = arith.mulf %139, %139 : f32
    %147 = arith.subf %145, %146 : f32
    %148 = vector.broadcast %139 : f32 to vector<8x32xf32>
    %149 = arith.subf %130, %148 : vector<8x32xf32>
    %cst_66 = arith.constant 9.99999974E-6 : f32
    %150 = arith.addf %147, %cst_66 : f32
    %151 = math.rsqrt %150 : f32
    %152 = vector.broadcast %151 : f32 to vector<8x32xf32>
    %153 = arith.mulf %149, %152 : vector<8x32xf32>
    %154 = vector.shape_cast %134 : vector<8x32xf32> to vector<1x8x32xf32>
    %cst_67 = arith.constant dense<0.000000e+00> : vector<1xf32>
    %155 = vector.multi_reduction <add>, %154, %cst_67 [1, 2] : vector<1x8x32xf32> to vector<1xf32>
    %156 = vector.shape_cast %155 : vector<1xf32> to vector<1x1x1xf32>
    %157 = vector.extract %156[0, 0, 0] : f32 from vector<1x1x1xf32>
    %cst_68 = arith.constant 2.560000e+02 : f32
    %158 = arith.divf %157, %cst_68 : f32
    %159 = arith.mulf %134, %134 : vector<8x32xf32>
    %160 = vector.shape_cast %159 : vector<8x32xf32> to vector<1x8x32xf32>
    %cst_69 = arith.constant dense<0.000000e+00> : vector<1xf32>
    %161 = vector.multi_reduction <add>, %160, %cst_69 [1, 2] : vector<1x8x32xf32> to vector<1xf32>
    %162 = vector.shape_cast %161 : vector<1xf32> to vector<1x1x1xf32>
    %163 = vector.extract %162[0, 0, 0] : f32 from vector<1x1x1xf32>
    %cst_70 = arith.constant 2.560000e+02 : f32
    %164 = arith.divf %163, %cst_70 : f32
    %165 = arith.mulf %158, %158 : f32
    %166 = arith.subf %164, %165 : f32
    %167 = vector.broadcast %158 : f32 to vector<8x32xf32>
    %168 = arith.subf %134, %167 : vector<8x32xf32>
    %cst_71 = arith.constant 9.99999974E-6 : f32
    %169 = arith.addf %166, %cst_71 : f32
    %170 = math.rsqrt %169 : f32
    %171 = vector.broadcast %170 : f32 to vector<8x32xf32>
    %172 = arith.mulf %168, %171 : vector<8x32xf32>
    %173 = tpu.concatenate %153, %172 in 0 : vector<8x32xf32>, vector<8x32xf32> -> vector<16x32xf32>
    %c0_72 = arith.constant 0 : index
    %c0_73 = arith.constant 0 : index
    %174 = vector.load %arg3[%c0_72, %c0_73] : memref<16x32xf32, #tpu.memory_space<vmem>>, vector<16x32xf32>
    tpu.vector_store %arg3[%c0_72, %c0_73], %173 {strides = array<i32>} : memref<16x32xf32, #tpu.memory_space<vmem>>, vector<16x32xf32>,
    return
  }
}

</mosaic_0001>

<llo_original>
// kernel: forward.1
$region0: #{forward.1}
  #allocation0 [shape = 'u32[]', space=smem, size = 0x4, offset = 0x4, fixed_abs, tag = 'smem constant byte address 0x4 - core index']
  #allocation1 [shape = 'u32[144,128]{1,0:T(1,128)}', space=vmem, size = 0x12000, scoped, tag = 'internal scratch']
  #allocation2 [shape = 'f32[104,32]{1,0:T(8,128)}', space=vmem, size = 0xd000, scoped, tag = 'scratch operand']
  %s0 = inlined_call_operand.vmem [shape: f32[80,8], index: 0, kind: input, shape index: {}]
  %s1 = inlined_call_operand.vmem [shape: f32[96,104], index: 1, kind: input, shape index: {}]
  %s2 = inlined_call_operand.vmem [shape: f32[80,32], index: 2, kind: input, shape index: {}]
  %s3 = inlined_call_operand.vmem [shape: f32[16,32], index: 3, kind: output, shape index: {}]
  %s4 = sld [smem:[#allocation0]]
  $region22: #{forward.1} parent=0
    _
  %s6 = ssub.s32 1, %s4
  %s7 = scalar_select 0, %s6, %s4
  // Predicated region
  $region2: #{forward.1} parent=0 // pred_check
    _
  $region3: #{forward.1} parent=0 // pred_check_branch
    %9 = sbr.rel (0) target = $region5
  $region4: #{forward.1} parent=0 // pred_region
    _
  $region5: #{forward.1} parent=0 // pred_fallthru
    _
  // Predicated region
  $region6: #{forward.1} parent=0 // pred_check
    _
  $region7: #{forward.1} parent=0 // pred_check_branch
    %11 = sbr.rel (0) target = $region9
  $region8: #{forward.1} parent=0 // pred_region
    _
  $region9: #{forward.1} parent=0 // pred_fallthru
    _
  // Predicated region
  $region10: #{forward.1} parent=0 // pred_check
    _
  $region11: #{forward.1} parent=0 // pred_check_branch
    %13 = sbr.rel (0) target = $region13
  $region12: #{forward.1} parent=0 // pred_region
    _
  $region13: #{forward.1} parent=0 // pred_fallthru
    _
  %v14 = vld [vmem:[%s2 + $0x40] sm:$0xff]
  %v15 = vld [vmem:[%s2] sm:$0xff]
  %v16 = vld [vmem:[%s2 + $0x8] sm:$0xff]
  %v17 = vld [vmem:[%s2 + $0x10] sm:$0xff]
  %v18 = vld [vmem:[%s2 + $0x18] sm:$0xff]
  %v19 = vld [vmem:[%s2 + $0x20] sm:$0xff]
  %v20 = vld [vmem:[%s2 + $0x28] sm:$0xff]
  %v21 = vld [vmem:[%s2 + $0x30] sm:$0xff]
  %v22 = vld [vmem:[%s2 + $0x38] sm:$0xff]
  %v23 = vld [vmem:[%s0] sm:$0xff]
  %v24 = vld [vmem:[%s0 + $0x8] sm:$0xff]
  %v25 = vld [vmem:[%s0 + $0x10] sm:$0xff]
  %v26 = vld [vmem:[%s0 + $0x18] sm:$0xff]
  %v27 = vld [vmem:[%s0 + $0x20] sm:$0xff]
  %v28 = vld [vmem:[%s0 + $0x28] sm:$0xff]
  %v29 = vld [vmem:[%s0 + $0x30] sm:$0xff]
  %v30 = vld [vmem:[%s0 + $0x38] sm:$0xff]
  %v31 = vld [vmem:[%s0 + $0x40] sm:$0xff]
  %v32 = vld [vmem:[%s0 + $0x48] sm:$0xff]
  %vm33 = vcmask 64512
  %v35 = vsel %vm33, %v23, 0
  %v38 = vsel %vm33, %v24, 0
  %v41 = vsel %vm33, %v25, 0
  %v44 = vsel %vm33, %v26, 0
  %v47 = vsel %vm33, %v27, 0
  %v50 = vsel %vm33, %v28, 0
  %v53 = vsel %vm33, %v29, 0
  %v56 = vsel %vm33, %v30, 0
  %v59 = vsel %vm33, %v31, 0
  %v62 = vsel %vm33, %v32, 0
  %64 = vmatprep.subr.mxu0 0.0
  %65 = vmatpush1.msra.mxu0 %v14
  %66 = vmatprep.subr.mxu0 0.0
  %67 = vmatpush1.msra.mxu0 0.0
  %68 = vmatprep.subr.mxu0 0.0
  %69 = vmatpush1.msra.mxu0 0.0
  %70 = vmatprep.subr.mxu0 0.0
  %71 = vmatpush1.msra.mxu0 0.0
  %72 = vmatprep.subr.mxu0 0.0
  %73 = vmatpush1.msra.mxu0 0.0
  %74 = vmatprep.subr.mxu0 0.0
  %75 = vmatpush1.msra.mxu0 0.0
  %76 = vmatprep.subr.mxu0 0.0
  %77 = vmatpush1.msra.mxu0 0.0
  %78 = vmatprep.subr.mxu0 0.0
  %79 = vmatpush1.msra.mxu0 0.0
  %80 = vmatprep.subr.mxu0 0.0
  %81 = vmatpush1.msra.mxu0 0.0
  %82 = vmatprep.subr.mxu0 0.0
  %83 = vmatpush1.msra.mxu0 0.0
  %84 = vmatprep.subr.mxu0 0.0
  %85 = vmatpush1.msra.mxu0 0.0
  %86 = vmatprep.subr.mxu0 0.0
  %87 = vmatpush1.msra.mxu0 0.0
  %88 = vmatprep.subr.mxu0 0.0
  %89 = vmatpush1.msra.mxu0 0.0
  %90 = vmatprep.subr.mxu0 0.0
  %91 = vmatpush1.msra.mxu0 0.0
  %92 = vmatprep.subr.mxu0 0.0
  %93 = vmatpush1.msra.mxu0 0.0
  %94 = vmatprep.subr.mxu0 0.0
  %95 = vmatpush1.msra.mxu0 0.0
  %96 = vmatprep.subr.mxu0 0.0
  %97 = vmatpush1.msra.mxu0 0.0
  %98 = vmatprep.subr.mxu0 0.0
  %99 = vmatpush1.msra.mxu0 0.0
  %100 = vmatprep.subr.mxu0 0.0
  %101 = vmatpush1.msra.mxu0 0.0
  %102 = vmatprep.subr.mxu0 0.0
  %103 = vmatpush1.msra.mxu0 0.0
  %104 = vmatprep.subr.mxu0 0.0
  %105 = vmatpush1.msra.mxu0 0.0
  %106 = vmatprep.subr.mxu0 0.0
  %107 = vmatpush1.msra.mxu0 0.0
  %108 = vmatprep.subr.mxu0 0.0
  %109 = vmatpush1.msra.mxu0 0.0
  %110 = vmatprep.subr.mxu0 0.0
  %111 = vmatpush1.msra.mxu0 0.0
  %112 = vmatprep.subr.mxu0 0.0
  %113 = vmatpush1.msra.mxu0 0.0
  %114 = vmatprep.subr.mxu0 0.0
  %115 = vmatpush1.msra.mxu0 0.0
  %116 = vmatprep.subr.mxu0 0.0
  %117 = vmatpush1.msra.mxu0 0.0
  %118 = vmatprep.subr.mxu0 0.0
  %119 = vmatpush1.msra.mxu0 0.0
  %120 = vmatprep.subr.mxu0 0.0
  %121 = vmatpush1.msra.mxu0 0.0
  %122 = vmatprep.subr.mxu0 0.0
  %123 = vmatpush1.msra.mxu0 0.0
  %124 = vmatprep.subr.mxu0 0.0
  %125 = vmatpush1.msra.mxu0 0.0
  %126 = vmatprep.subr.mxu0 0.0
  %127 = vmatpush1.msra.mxu0 0.0
  %128 = vmatprep.mubr.f32.mxu0 0.0
  %129 = vmatmul.mubr.f32.gmra.mrb[0].mxu0 %v35
  %v130 = vpop.f32.mrb[0].mxu0
  %v131 = vadd.f32 0.0, %v130
  %v132 = vpop.f32.mrb[0].mxu0
  %133 = vmatprep.mubr.f32.mxu0 0.0
  %134 = vmatmul.mubr.f32.gmra.mrb[0].mxu0 %v38
  %v135 = vpop.f32.mrb[0].mxu0
  %v136 = vadd.f32 0.0, %v135
  %v137 = vpop.f32.mrb[0].mxu0
  %138 = vmatprep.mubr.f32.mxu0 0.0
  %139 = vmatmul.mubr.f32.gmra.mrb[0].mxu0 %v41
  %v140 = vpop.f32.mrb[0].mxu0
  %v141 = vadd.f32 0.0, %v140
  %v142 = vpop.f32.mrb[0].mxu0
  %143 = vmatprep.mubr.f32.mxu0 0.0
  %144 = vmatmul.mubr.f32.gmra.mrb[0].mxu0 %v44
  %v145 = vpop.f32.mrb[0].mxu0
  %v146 = vadd.f32 0.0, %v145
  %v147 = vpop.f32.mrb[0].mxu0
  %148 = vmatprep.mubr.f32.mxu0 0.0
  %149 = vmatmul.mubr.f32.gmra.mrb[0].mxu0 %v47
  %v150 = vpop.f32.mrb[0].mxu0
  %v151 = vadd.f32 0.0, %v150
  %v152 = vpop.f32.mrb[0].mxu0
  %153 = vmatprep.mubr.f32.mxu0 0.0
  %154 = vmatmul.mubr.f32.gmra.mrb[0].mxu0 %v50
  %v155 = vpop.f32.mrb[0].mxu0
  %v156 = vadd.f32 0.0, %v155
  %v157 = vpop.f32.mrb[0].mxu0
  %158 = vmatprep.mubr.f32.mxu0 0.0
  %159 = vmatmul.mubr.f32.gmra.mrb[0].mxu0 %v53
  %v160 = vpop.f32.mrb[0].mxu0
  %v161 = vadd.f32 0.0, %v160
  %v162 = vpop.f32.mrb[0].mxu0
  %163 = vmatprep.mubr.f32.mxu0 0.0
  %164 = vmatmul.mubr.f32.gmra.mrb[0].mxu0 %v56
  %v165 = vpop.f32.mrb[0].mxu0
  %v166 = vadd.f32 0.0, %v165
  %v167 = vpop.f32.mrb[0].mxu0
  %168 = vmatprep.mubr.f32.mxu0 0.0
  %169 = vmatmul.mubr.f32.gmra.mrb[0].mxu0 %v59
  %v170 = vpop.f32.mrb[0].mxu0
  %v171 = vadd.f32 0.0, %v170
  %v172 = vpop.f32.mrb[0].mxu0
  %173 = vmatprep.mubr.f32.mxu0 0.0
  %174 = vmatmul.mubr.f32.gmra.mrb[0].mxu0 %v62
  %v175 = vpop.f32.mrb[0].mxu0
  %v176 = vadd.f32 0.0, %v175
  %v177 = vpop.f32.mrb[0].mxu0
  %178 = vdwg.mxu0
  %vm179 = vcmask 261120
  %180 = vst.msk [vmem:[#allocation2] sm:$0xff] %vm179, %v131
  %181 = vst.msk [vmem:[#allocation2 + $0x8] sm:$0xff] %vm179, %v136
  %182 = vst.msk [vmem:[#allocation2 + $0x10] sm:$0xff] %vm179, %v141
  %183 = vst.msk [vmem:[#allocation2 + $0x18] sm:$0xff] %vm179, %v146
  %184 = vst.msk [vmem:[#allocation2 + $0x20] sm:$0xff] %vm179, %v151
  %185 = vst.msk [vmem:[#allocation2 + $0x28] sm:$0xff] %vm179, %v156
  %186 = vst.msk [vmem:[#allocation2 + $0x30] sm:$0xff] %vm179, %v161
  %187 = vst.msk [vmem:[#allocation2 + $0x38] sm:$0xff] %vm179, %v166
  %188 = vst.msk [vmem:[#allocation2 + $0x40] sm:$0xff] %vm179, %v171
  %189 = vst.msk [vmem:[#allocation2 + $0x48] sm:$0xff] %vm179, %v176
  %190 = vst.msk [vmem:[#allocation2 + $0x50] sm:$0xff] %vm179, 0.0
  %191 = vst.msk [vmem:[#allocation2 + $0x58] sm:$0xff] %vm179, 0.0
  %v192 = vld [vmem:[%s2 + $0x48] sm:$0xff]
  %193 = vst.msk [vmem:[#allocation2 + $0x60] sm:$0xff] %vm179, %v192
  %v194 = vld [vmem:[%s1] sm:$0xff]
  %v195 = vld [vmem:[%s1 + $0x8] sm:$0xff]
  %v196 = vld [vmem:[%s1 + $0x10] sm:$0xff]
  %v197 = vld [vmem:[%s1 + $0x18] sm:$0xff]
  %v198 = vld [vmem:[#allocation2] sm:$0xff]
  %v199 = vld [vmem:[#allocation2 + $0x8] sm:$0xff]
  %v200 = vld [vmem:[#allocation2 + $0x10] sm:$0xff]
  %v201 = vld [vmem:[#allocation2 + $0x18] sm:$0xff]
  %v202 = vld [vmem:[#allocation2 + $0x20] sm:$0xff]
  %v203 = vld [vmem:[#allocation2 + $0x28] sm:$0xff]
  %v204 = vld [vmem:[#allocation2 + $0x30] sm:$0xff]
  %v205 = vld [vmem:[#allocation2 + $0x38] sm:$0xff]
  %v206 = vld [vmem:[#allocation2 + $0x40] sm:$0xff]
  %v207 = vld [vmem:[#allocation2 + $0x48] sm:$0xff]
  %v208 = vld [vmem:[#allocation2 + $0x50] sm:$0xff]
  %v209 = vld [vmem:[#allocation2 + $0x58] sm:$0xff]
  %v210 = vld [vmem:[#allocation2 + $0x60] sm:$0xff]
  %vm211 = vcmask 850944
  %v213 = vsel %vm211, %v194, 0
  %v216 = vsel %vm211, %v195, 0
  %v219 = vsel %vm211, %v196, 0
  %v222 = vsel %vm211, %v197, 0
  %224 = vmatprep.subr.mxu0 0.0
  %225 = vmatpush1.msra.mxu0 %v198
  %226 = vmatprep.subr.mxu0 0.0
  %227 = vmatpush1.msra.mxu0 %v199
  %228 = vmatprep.subr.mxu0 0.0
  %229 = vmatpush1.msra.mxu0 %v200
  %230 = vmatprep.subr.mxu0 0.0
  %231 = vmatpush1.msra.mxu0 %v201
  %232 = vmatprep.subr.mxu0 0.0
  %233 = vmatpush1.msra.mxu0 %v202
  %234 = vmatprep.subr.mxu0 0.0
  %235 = vmatpush1.msra.mxu0 %v203
  %236 = vmatprep.subr.mxu0 0.0
  %237 = vmatpush1.msra.mxu0 %v204
  %238 = vmatprep.subr.mxu0 0.0
  %239 = vmatpush1.msra.mxu0 %v205
  %240 = vmatprep.subr.mxu0 0.0
  %241 = vmatpush1.msra.mxu0 %v206
  %242 = vmatprep.subr.mxu0 0.0
  %243 = vmatpush1.msra.mxu0 %v207
  %244 = vmatprep.subr.mxu0 0.0
  %245 = vmatpush1.msra.mxu0 %v208
  %246 = vmatprep.subr.mxu0 0.0
  %247 = vmatpush1.msra.mxu0 %v209
  %248 = vmatprep.subr.mxu0 0.0
  %249 = vmatpush1.msra.mxu0 %v210
  %250 = vmatprep.subr.mxu0 0.0
  %251 = vmatpush1.msra.mxu0 0.0
  %252 = vmatprep.subr.mxu0 0.0
  %253 = vmatpush1.msra.mxu0 0.0
  %254 = vmatprep.subr.mxu0 0.0
  %255 = vmatpush1.msra.mxu0 0.0
  %256 = vmatprep.subr.mxu0 0.0
  %257 = vmatpush1.msra.mxu0 0.0
  %258 = vmatprep.subr.mxu0 0.0
  %259 = vmatpush1.msra.mxu0 0.0
  %260 = vmatprep.subr.mxu0 0.0
  %261 = vmatpush1.msra.mxu0 0.0
  %262 = vmatprep.subr.mxu0 0.0
  %263 = vmatpush1.msra.mxu0 0.0
  %264 = vmatprep.subr.mxu0 0.0
  %265 = vmatpush1.msra.mxu0 0.0
  %266 = vmatprep.subr.mxu0 0.0
  %267 = vmatpush1.msra.mxu0 0.0
  %268 = vmatprep.subr.mxu0 0.0
  %269 = vmatpush1.msra.mxu0 0.0
  %270 = vmatprep.subr.mxu0 0.0
  %271 = vmatpush1.msra.mxu0 0.0
  %272 = vmatprep.subr.mxu0 0.0
  %273 = vmatpush1.msra.mxu0 0.0
  %274 = vmatprep.subr.mxu0 0.0
  %275 = vmatpush1.msra.mxu0 0.0
  %276 = vmatprep.subr.mxu0 0.0
  %277 = vmatpush1.msra.mxu0 0.0
  %278 = vmatprep.subr.mxu0 0.0
  %279 = vmatpush1.msra.mxu0 0.0
  %280 = vmatprep.subr.mxu0 0.0
  %281 = vmatpush1.msra.mxu0 0.0
  %282 = vmatprep.subr.mxu0 0.0
  %283 = vmatpush1.msra.mxu0 0.0
  %284 = vmatprep.subr.mxu0 0.0
  %285 = vmatpush1.msra.mxu0 0.0
  %286 = vmatprep.subr.mxu0 0.0
  %287 = vmatpush1.msra.mxu0 0.0
  %288 = vmatprep.mubr.f32.mxu0 0.0
  %289 = vmatmul.mubr.f32.gmra.mrb[0].mxu0 %v213
  %v290 = vpop.f32.mrb[0].mxu0
  %v291 = vadd.f32 0.0, %v290
  %v292 = vpop.f32.mrb[0].mxu0
  %293 = vmatprep.mubr.f32.mxu0 0.0
  %294 = vmatmul.mubr.f32.gmra.mrb[0].mxu0 %v216
  %v295 = vpop.f32.mrb[0].mxu0
  %v296 = vadd.f32 0.0, %v295
  %v297 = vpop.f32.mrb[0].mxu0
  %298 = vmatprep.mubr.f32.mxu0 0.0
  %299 = vmatmul.mubr.f32.gmra.mrb[0].mxu0 %v219
  %v300 = vpop.f32.mrb[0].mxu0
  %v301 = vadd.f32 0.0, %v300
  %v302 = vpop.f32.mrb[0].mxu0
  %303 = vmatprep.mubr.f32.mxu0 0.0
  %304 = vmatmul.mubr.f32.gmra.mrb[0].mxu0 %v222
  %v305 = vpop.f32.mrb[0].mxu0
  %v306 = vadd.f32 0.0, %v305
  %v307 = vpop.f32.mrb[0].mxu0
  %308 = vdwg.mxu0
  %v310 = vsel %vm179, %v291, 0
  %312 = vmatprep.subr.mxu0 0.0
  %313 = vmatpush1.msra.mxu0 %v15
  %314 = vmatprep.subr.mxu0 0.0
  %315 = vmatpush1.msra.mxu0 %v16
  %316 = vmatprep.subr.mxu0 0.0
  %317 = vmatpush1.msra.mxu0 %v17
  %318 = vmatprep.subr.mxu0 0.0
  %319 = vmatpush1.msra.mxu0 %v18
  %320 = vmatprep.subr.mxu0 0.0
  %321 = vmatpush1.msra.mxu0 0.0
  %322 = vmatprep.subr.mxu0 0.0
  %323 = vmatpush1.msra.mxu0 0.0
  %324 = vmatprep.subr.mxu0 0.0
  %325 = vmatpush1.msra.mxu0 0.0
  %326 = vmatprep.subr.mxu0 0.0
  %327 = vmatpush1.msra.mxu0 0.0
  %328 = vmatprep.subr.mxu0 0.0
  %329 = vmatpush1.msra.mxu0 0.0
  %330 = vmatprep.subr.mxu0 0.0
  %331 = vmatpush1.msra.mxu0 0.0
  %332 = vmatprep.subr.mxu0 0.0
  %333 = vmatpush1.msra.mxu0 0.0
  %334 = vmatprep.subr.mxu0 0.0
  %335 = vmatpush1.msra.mxu0 0.0
  %336 = vmatprep.subr.mxu0 0.0
  %337 = vmatpush1.msra.mxu0 0.0
  %338 = vmatprep.subr.mxu0 0.0
  %339 = vmatpush1.msra.mxu0 0.0
  %340 = vmatprep.subr.mxu0 0.0
  %341 = vmatpush1.msra.mxu0 0.0
  %342 = vmatprep.subr.mxu0 0.0
  %343 = vmatpush1.msra.mxu0 0.0
  %344 = vmatprep.subr.mxu0 0.0
  %345 = vmatpush1.msra.mxu0 0.0
  %346 = vmatprep.subr.mxu0 0.0
  %347 = vmatpush1.msra.mxu0 0.0
  %348 = vmatprep.subr.mxu0 0.0
  %349 = vmatpush1.msra.mxu0 0.0
  %350 = vmatprep.subr.mxu0 0.0
  %351 = vmatpush1.msra.mxu0 0.0
  %352 = vmatprep.subr.mxu0 0.0
  %353 = vmatpush1.msra.mxu0 0.0
  %354 = vmatprep.subr.mxu0 0.0
  %355 = vmatpush1.msra.mxu0 0.0
  %356 = vmatprep.subr.mxu0 0.0
  %357 = vmatpush1.msra.mxu0 0.0
  %358 = vmatprep.subr.mxu0 0.0
  %359 = vmatpush1.msra.mxu0 0.0
  %360 = vmatprep.subr.mxu0 0.0
  %361 = vmatpush1.msra.mxu0 0.0
  %362 = vmatprep.subr.mxu0 0.0
  %363 = vmatpush1.msra.mxu0 0.0
  %364 = vmatprep.subr.mxu0 0.0
  %365 = vmatpush1.msra.mxu0 0.0
  %366 = vmatprep.subr.mxu0 0.0
  %367 = vmatpush1.msra.mxu0 0.0
  %368 = vmatprep.subr.mxu0 0.0
  %369 = vmatpush1.msra.mxu0 0.0
  %370 = vmatprep.subr.mxu0 0.0
  %371 = vmatpush1.msra.mxu0 0.0
  %372 = vmatprep.subr.mxu0 0.0
  %373 = vmatpush1.msra.mxu0 0.0
  %374 = vmatprep.subr.mxu0 0.0
  %375 = vmatpush1.msra.mxu0 0.0
  %376 = vmatprep.mubr.f32.mxu0 0.0
  %377 = vmatmul.mubr.f32.gmra.mrb[0].mxu0 %v310
  %v378 = vpop.f32.mrb[0].mxu0
  %v379 = vadd.f32 0.0, %v378
  %v380 = vpop.f32.mrb[0].mxu0
  %381 = vdwg.mxu0
  %v382 = vmax.f32 %v379, 0.0
  %v383 = vadd.f32 %v382, %v301
  %v385 = vsel %vm179, %v296, 0
  %387 = vmatprep.subr.mxu0 0.0
  %388 = vmatpush1.msra.mxu0 %v19
  %389 = vmatprep.subr.mxu0 0.0
  %390 = vmatpush1.msra.mxu0 %v20
  %391 = vmatprep.subr.mxu0 0.0
  %392 = vmatpush1.msra.mxu0 %v21
  %393 = vmatprep.subr.mxu0 0.0
  %394 = vmatpush1.msra.mxu0 %v22
  %395 = vmatprep.subr.mxu0 0.0
  %396 = vmatpush1.msra.mxu0 0.0
  %397 = vmatprep.subr.mxu0 0.0
  %398 = vmatpush1.msra.mxu0 0.0
  %399 = vmatprep.subr.mxu0 0.0
  %400 = vmatpush1.msra.mxu0 0.0
  %401 = vmatprep.subr.mxu0 0.0
  %402 = vmatpush1.msra.mxu0 0.0
  %403 = vmatprep.subr.mxu0 0.0
  %404 = vmatpush1.msra.mxu0 0.0
  %405 = vmatprep.subr.mxu0 0.0
  %406 = vmatpush1.msra.mxu0 0.0
  %407 = vmatprep.subr.mxu0 0.0
  %408 = vmatpush1.msra.mxu0 0.0
  %409 = vmatprep.subr.mxu0 0.0
  %410 = vmatpush1.msra.mxu0 0.0
  %411 = vmatprep.subr.mxu0 0.0
  %412 = vmatpush1.msra.mxu0 0.0
  %413 = vmatprep.subr.mxu0 0.0
  %414 = vmatpush1.msra.mxu0 0.0
  %415 = vmatprep.subr.mxu0 0.0
  %416 = vmatpush1.msra.mxu0 0.0
  %417 = vmatprep.subr.mxu0 0.0
  %418 = vmatpush1.msra.mxu0 0.0
  %419 = vmatprep.subr.mxu0 0.0
  %420 = vmatpush1.msra.mxu0 0.0
  %421 = vmatprep.subr.mxu0 0.0
  %422 = vmatpush1.msra.mxu0 0.0
  %423 = vmatprep.subr.mxu0 0.0
  %424 = vmatpush1.msra.mxu0 0.0
  %425 = vmatprep.subr.mxu0 0.0
  %426 = vmatpush1.msra.mxu0 0.0
  %427 = vmatprep.subr.mxu0 0.0
  %428 = vmatpush1.msra.mxu0 0.0
  %429 = vmatprep.subr.mxu0 0.0
  %430 = vmatpush1.msra.mxu0 0.0
  %431 = vmatprep.subr.mxu0 0.0
  %432 = vmatpush1.msra.mxu0 0.0
  %433 = vmatprep.subr.mxu0 0.0
  %434 = vmatpush1.msra.mxu0 0.0
  %435 = vmatprep.subr.mxu0 0.0
  %436 = vmatpush1.msra.mxu0 0.0
  %437 = vmatprep.subr.mxu0 0.0
  %438 = vmatpush1.msra.mxu0 0.0
  %439 = vmatprep.subr.mxu0 0.0
  %440 = vmatpush1.msra.mxu0 0.0
  %441 = vmatprep.subr.mxu0 0.0
  %442 = vmatpush1.msra.mxu0 0.0
  %443 = vmatprep.subr.mxu0 0.0
  %444 = vmatpush1.msra.mxu0 0.0
  %445 = vmatprep.subr.mxu0 0.0
  %446 = vmatpush1.msra.mxu0 0.0
  %447 = vmatprep.subr.mxu0 0.0
  %448 = vmatpush1.msra.mxu0 0.0
  %449 = vmatprep.subr.mxu0 0.0
  %450 = vmatpush1.msra.mxu0 0.0
  %451 = vmatprep.mubr.f32.mxu0 0.0
  %452 = vmatmul.mubr.f32.gmra.mrb[0].mxu0 %v385
  %v453 = vpop.f32.mrb[0].mxu0
  %v454 = vadd.f32 0.0, %v453
  %v455 = vpop.f32.mrb[0].mxu0
  %456 = vdwg.mxu0
  %v457 = vmax.f32 %v454, 0.0
  %v458 = vadd.f32 %v457, %v306
  %v459 = vsel %vm179, %v383, 0.0
  %460 = vadd.xlane.f32.xlu0 %v459
  %v461 = vpop.xlane.xlu0 %460
  %v462 = vrot.slane %v461, 4
  %v463 = vadd.f32 %v461, %v462
  %v464 = vrot.slane %v463, 2
  %v465 = vadd.f32 %v463, %v464
  %v466 = vrot.slane %v465, 1
  %v467 = vadd.f32 %v465, %v466
  %s468 = vtos %v467
  %v469 = vrcp.pop 256.0
  %s470 = vtos %v469
  %s471 = smul.f32 %s468, %s470
  %v472 = vmul.f32 %v383, %v383
  %v473 = vsel %vm179, %v472, 0.0
  %474 = vadd.xlane.f32.xlu0 %v473
  %v475 = vpop.xlane.xlu0 %474
  %v476 = vrot.slane %v475, 4
  %v477 = vadd.f32 %v475, %v476
  %v478 = vrot.slane %v477, 2
  %v479 = vadd.f32 %v477, %v478
  %v480 = vrot.slane %v479, 1
  %v481 = vadd.f32 %v479, %v480
  %s482 = vtos %v481
  %v483 = vrcp.pop 256.0
  %s484 = vtos %v483
  %s485 = smul.f32 %s482, %s484
  %s486 = smul.f32 %s471, %s471
  %s487 = ssub.f32 %s485, %s486
  %v488 = vstv %s471
  %v489 = vsub.f32 %v383, %v488
  %s490 = sadd.f32 %s487, 1e-05
  %v491 = vstv %s490
  %v492 = vrsqrt.pop %v491
  %s493 = vtos %v492
  %v494 = vstv %s493
  %v495 = vmul.f32 %v489, %v494
  %v496 = vsel %vm179, %v458, 0.0
  %497 = vadd.xlane.f32.xlu0 %v496
  %v498 = vpop.xlane.xlu0 %497
  %v499 = vrot.slane %v498, 4
  %v500 = vadd.f32 %v498, %v499
  %v501 = vrot.slane %v500, 2
  %v502 = vadd.f32 %v500, %v501
  %v503 = vrot.slane %v502, 1
  %v504 = vadd.f32 %v502, %v503
  %s505 = vtos %v504
  %v506 = vrcp.pop 256.0
  %s507 = vtos %v506
  %s508 = smul.f32 %s505, %s507
  %v509 = vmul.f32 %v458, %v458
  %v510 = vsel %vm179, %v509, 0.0
  %511 = vadd.xlane.f32.xlu0 %v510
  %v512 = vpop.xlane.xlu0 %511
  %v513 = vrot.slane %v512, 4
  %v514 = vadd.f32 %v512, %v513
  %v515 = vrot.slane %v514, 2
  %v516 = vadd.f32 %v514, %v515
  %v517 = vrot.slane %v516, 1
  %v518 = vadd.f32 %v516, %v517
  %s519 = vtos %v518
  %v520 = vrcp.pop 256.0
  %s521 = vtos %v520
  %s522 = smul.f32 %s519, %s521
  %s523 = smul.f32 %s508, %s508
  %s524 = ssub.f32 %s522, %s523
  %v525 = vstv %s508
  %v526 = vsub.f32 %v458, %v525
  %s527 = sadd.f32 %s524, 1e-05
  %v528 = vstv %s527
  %v529 = vrsqrt.pop %v528
  %s530 = vtos %v529
  %v531 = vstv %s530
  %v532 = vmul.f32 %v526, %v531
  %533 = vst.msk [vmem:[#allocation2 + $0x50] sm:$0xff] %vm179, %v495
  %534 = vst.msk [vmem:[#allocation2 + $0x58] sm:$0xff] %vm179, %v532
  %v535 = vld [vmem:[%s1 + $0x20] sm:$0xff]
  %v536 = vld [vmem:[%s1 + $0x28] sm:$0xff]
  %v537 = vld [vmem:[%s1 + $0x30] sm:$0xff]
  %v538 = vld [vmem:[%s1 + $0x38] sm:$0xff]
  %v539 = vld [vmem:[#allocation2] sm:$0xff]
  %v540 = vld [vmem:[#allocation2 + $0x8] sm:$0xff]
  %v541 = vld [vmem:[#allocation2 + $0x10] sm:$0xff]
  %v542 = vld [vmem:[#allocation2 + $0x18] sm:$0xff]
  %v543 = vld [vmem:[#allocation2 + $0x20] sm:$0xff]
  %v544 = vld [vmem:[#allocation2 + $0x28] sm:$0xff]
  %v545 = vld [vmem:[#allocation2 + $0x30] sm:$0xff]
  %v546 = vld [vmem:[#allocation2 + $0x38] sm:$0xff]
  %v547 = vld [vmem:[#allocation2 + $0x40] sm:$0xff]
  %v548 = vld [vmem:[#allocation2 + $0x48] sm:$0xff]
  %v549 = vld [vmem:[#allocation2 + $0x50] sm:$0xff]
  %v550 = vld [vmem:[#allocation2 + $0x58] sm:$0xff]
  %v551 = vld [vmem:[#allocation2 + $0x60] sm:$0xff]
  %v553 = vsel %vm211, %v535, 0
  %v556 = vsel %vm211, %v536, 0
  %v559 = vsel %vm211, %v537, 0
  %v562 = vsel %vm211, %v538, 0
  %564 = vmatprep.subr.mxu0 0.0
  %565 = vmatpush1.msra.mxu0 %v539
  %566 = vmatprep.subr.mxu0 0.0
  %567 = vmatpush1.msra.mxu0 %v540
  %568 = vmatprep.subr.mxu0 0.0
  %569 = vmatpush1.msra.mxu0 %v541
  %570 = vmatprep.subr.mxu0 0.0
  %571 = vmatpush1.msra.mxu0 %v542
  %572 = vmatprep.subr.mxu0 0.0
  %573 = vmatpush1.msra.mxu0 %v543
  %574 = vmatprep.subr.mxu0 0.0
  %575 = vmatpush1.msra.mxu0 %v544
  %576 = vmatprep.subr.mxu0 0.0
  %577 = vmatpush1.msra.mxu0 %v545
  %578 = vmatprep.subr.mxu0 0.0
  %579 = vmatpush1.msra.mxu0 %v546
  %580 = vmatprep.subr.mxu0 0.0
  %581 = vmatpush1.msra.mxu0 %v547
  %582 = vmatprep.subr.mxu0 0.0
  %583 = vmatpush1.msra.mxu0 %v548
  %584 = vmatprep.subr.mxu0 0.0
  %585 = vmatpush1.msra.mxu0 %v549
  %586 = vmatprep.subr.mxu0 0.0
  %587 = vmatpush1.msra.mxu0 %v550
  %588 = vmatprep.subr.mxu0 0.0
  %589 = vmatpush1.msra.mxu0 %v551
  %590 = vmatprep.subr.mxu0 0.0
  %591 = vmatpush1.msra.mxu0 0.0
  %592 = vmatprep.subr.mxu0 0.0
  %593 = vmatpush1.msra.mxu0 0.0
  %594 = vmatprep.subr.mxu0 0.0
  %595 = vmatpush1.msra.mxu0 0.0
  %596 = vmatprep.subr.mxu0 0.0
  %597 = vmatpush1.msra.mxu0 0.0
  %598 = vmatprep.subr.mxu0 0.0
  %599 = vmatpush1.msra.mxu0 0.0
  %600 = vmatprep.subr.mxu0 0.0
  %601 = vmatpush1.msra.mxu0 0.0
  %602 = vmatprep.subr.mxu0 0.0
  %603 = vmatpush1.msra.mxu0 0.0
  %604 = vmatprep.subr.mxu0 0.0
  %605 = vmatpush1.msra.mxu0 0.0
  %606 = vmatprep.subr.mxu0 0.0
  %607 = vmatpush1.msra.mxu0 0.0
  %608 = vmatprep.subr.mxu0 0.0
  %609 = vmatpush1.msra.mxu0 0.0
  %610 = vmatprep.subr.mxu0 0.0
  %611 = vmatpush1.msra.mxu0 0.0
  %612 = vmatprep.subr.mxu0 0.0
  %613 = vmatpush1.msra.mxu0 0.0
  %614 = vmatprep.subr.mxu0 0.0
  %615 = vmatpush1.msra.mxu0 0.0
  %616 = vmatprep.subr.mxu0 0.0
  %617 = vmatpush1.msra.mxu0 0.0
  %618 = vmatprep.subr.mxu0 0.0
  %619 = vmatpush1.msra.mxu0 0.0
  %620 = vmatprep.subr.mxu0 0.0
  %621 = vmatpush1.msra.mxu0 0.0
  %622 = vmatprep.subr.mxu0 0.0
  %623 = vmatpush1.msra.mxu0 0.0
  %624 = vmatprep.subr.mxu0 0.0
  %625 = vmatpush1.msra.mxu0 0.0
  %626 = vmatprep.subr.mxu0 0.0
  %627 = vmatpush1.msra.mxu0 0.0
  %628 = vmatprep.mubr.f32.mxu0 0.0
  %629 = vmatmul.mubr.f32.gmra.mrb[0].mxu0 %v553
  %v630 = vpop.f32.mrb[0].mxu0
  %v631 = vadd.f32 0.0, %v630
  %v632 = vpop.f32.mrb[0].mxu0
  %633 = vmatprep.mubr.f32.mxu0 0.0
  %634 = vmatmul.mubr.f32.gmra.mrb[0].mxu0 %v556
  %v635 = vpop.f32.mrb[0].mxu0
  %v636 = vadd.f32 0.0, %v635
  %v637 = vpop.f32.mrb[0].mxu0
  %638 = vmatprep.mubr.f32.mxu0 0.0
  %639 = vmatmul.mubr.f32.gmra.mrb[0].mxu0 %v559
  %v640 = vpop.f32.mrb[0].mxu0
  %v641 = vadd.f32 0.0, %v640
  %v642 = vpop.f32.mrb[0].mxu0
  %643 = vmatprep.mubr.f32.mxu0 0.0
  %644 = vmatmul.mubr.f32.gmra.mrb[0].mxu0 %v562
  %v645 = vpop.f32.mrb[0].mxu0
  %v646 = vadd.f32 0.0, %v645
  %v647 = vpop.f32.mrb[0].mxu0
  %648 = vdwg.mxu0
  %v650 = vsel %vm179, %v631, 0
  %652 = vmatprep.subr.mxu0 0.0
  %653 = vmatpush1.msra.mxu0 %v15
  %654 = vmatprep.subr.mxu0 0.0
  %655 = vmatpush1.msra.mxu0 %v16
  %656 = vmatprep.subr.mxu0 0.0
  %657 = vmatpush1.msra.mxu0 %v17
  %658 = vmatprep.subr.mxu0 0.0
  %659 = vmatpush1.msra.mxu0 %v18
  %660 = vmatprep.subr.mxu0 0.0
  %661 = vmatpush1.msra.mxu0 0.0
  %662 = vmatprep.subr.mxu0 0.0
  %663 = vmatpush1.msra.mxu0 0.0
  %664 = vmatprep.subr.mxu0 0.0
  %665 = vmatpush1.msra.mxu0 0.0
  %666 = vmatprep.subr.mxu0 0.0
  %667 = vmatpush1.msra.mxu0 0.0
  %668 = vmatprep.subr.mxu0 0.0
  %669 = vmatpush1.msra.mxu0 0.0
  %670 = vmatprep.subr.mxu0 0.0
  %671 = vmatpush1.msra.mxu0 0.0
  %672 = vmatprep.subr.mxu0 0.0
  %673 = vmatpush1.msra.mxu0 0.0
  %674 = vmatprep.subr.mxu0 0.0
  %675 = vmatpush1.msra.mxu0 0.0
  %676 = vmatprep.subr.mxu0 0.0
  %677 = vmatpush1.msra.mxu0 0.0
  %678 = vmatprep.subr.mxu0 0.0
  %679 = vmatpush1.msra.mxu0 0.0
  %680 = vmatprep.subr.mxu0 0.0
  %681 = vmatpush1.msra.mxu0 0.0
  %682 = vmatprep.subr.mxu0 0.0
  %683 = vmatpush1.msra.mxu0 0.0
  %684 = vmatprep.subr.mxu0 0.0
  %685 = vmatpush1.msra.mxu0 0.0
  %686 = vmatprep.subr.mxu0 0.0
  %687 = vmatpush1.msra.mxu0 0.0
  %688 = vmatprep.subr.mxu0 0.0
  %689 = vmatpush1.msra.mxu0 0.0
  %690 = vmatprep.subr.mxu0 0.0
  %691 = vmatpush1.msra.mxu0 0.0
  %692 = vmatprep.subr.mxu0 0.0
  %693 = vmatpush1.msra.mxu0 0.0
  %694 = vmatprep.subr.mxu0 0.0
  %695 = vmatpush1.msra.mxu0 0.0
  %696 = vmatprep.subr.mxu0 0.0
  %697 = vmatpush1.msra.mxu0 0.0
  %698 = vmatprep.subr.mxu0 0.0
  %699 = vmatpush1.msra.mxu0 0.0
  %700 = vmatprep.subr.mxu0 0.0
  %701 = vmatpush1.msra.mxu0 0.0
  %702 = vmatprep.subr.mxu0 0.0
  %703 = vmatpush1.msra.mxu0 0.0
  %704 = vmatprep.subr.mxu0 0.0
  %705 = vmatpush1.msra.mxu0 0.0
  %706 = vmatprep.subr.mxu0 0.0
  %707 = vmatpush1.msra.mxu0 0.0
  %708 = vmatprep.subr.mxu0 0.0
  %709 = vmatpush1.msra.mxu0 0.0
  %710 = vmatprep.subr.mxu0 0.0
  %711 = vmatpush1.msra.mxu0 0.0
  %712 = vmatprep.subr.mxu0 0.0
  %713 = vmatpush1.msra.mxu0 0.0
  %714 = vmatprep.subr.mxu0 0.0
  %715 = vmatpush1.msra.mxu0 0.0
  %716 = vmatprep.mubr.f32.mxu0 0.0
  %717 = vmatmul.mubr.f32.gmra.mrb[0].mxu0 %v650
  %v718 = vpop.f32.mrb[0].mxu0
  %v719 = vadd.f32 0.0, %v718
  %v720 = vpop.f32.mrb[0].mxu0
  %721 = vdwg.mxu0
  %v722 = vmax.f32 %v719, 0.0
  %v723 = vadd.f32 %v722, %v641
  %v725 = vsel %vm179, %v636, 0
  %727 = vmatprep.subr.mxu0 0.0
  %728 = vmatpush1.msra.mxu0 %v19
  %729 = vmatprep.subr.mxu0 0.0
  %730 = vmatpush1.msra.mxu0 %v20
  %731 = vmatprep.subr.mxu0 0.0
  %732 = vmatpush1.msra.mxu0 %v21
  %733 = vmatprep.subr.mxu0 0.0
  %734 = vmatpush1.msra.mxu0 %v22
  %735 = vmatprep.subr.mxu0 0.0
  %736 = vmatpush1.msra.mxu0 0.0
  %737 = vmatprep.subr.mxu0 0.0
  %738 = vmatpush1.msra.mxu0 0.0
  %739 = vmatprep.subr.mxu0 0.0
  %740 = vmatpush1.msra.mxu0 0.0
  %741 = vmatprep.subr.mxu0 0.0
  %742 = vmatpush1.msra.mxu0 0.0
  %743 = vmatprep.subr.mxu0 0.0
  %744 = vmatpush1.msra.mxu0 0.0
  %745 = vmatprep.subr.mxu0 0.0
  %746 = vmatpush1.msra.mxu0 0.0
  %747 = vmatprep.subr.mxu0 0.0
  %748 = vmatpush1.msra.mxu0 0.0
  %749 = vmatprep.subr.mxu0 0.0
  %750 = vmatpush1.msra.mxu0 0.0
  %751 = vmatprep.subr.mxu0 0.0
  %752 = vmatpush1.msra.mxu0 0.0
  %753 = vmatprep.subr.mxu0 0.0
  %754 = vmatpush1.msra.mxu0 0.0
  %755 = vmatprep.subr.mxu0 0.0
  %756 = vmatpush1.msra.mxu0 0.0
  %757 = vmatprep.subr.mxu0 0.0
  %758 = vmatpush1.msra.mxu0 0.0
  %759 = vmatprep.subr.mxu0 0.0
  %760 = vmatpush1.msra.mxu0 0.0
  %761 = vmatprep.subr.mxu0 0.0
  %762 = vmatpush1.msra.mxu0 0.0
  %763 = vmatprep.subr.mxu0 0.0
  %764 = vmatpush1.msra.mxu0 0.0
  %765 = vmatprep.subr.mxu0 0.0
  %766 = vmatpush1.msra.mxu0 0.0
  %767 = vmatprep.subr.mxu0 0.0
  %768 = vmatpush1.msra.mxu0 0.0
  %769 = vmatprep.subr.mxu0 0.0
  %770 = vmatpush1.msra.mxu0 0.0
  %771 = vmatprep.subr.mxu0 0.0
  %772 = vmatpush1.msra.mxu0 0.0
  %773 = vmatprep.subr.mxu0 0.0
  %774 = vmatpush1.msra.mxu0 0.0
  %775 = vmatprep.subr.mxu0 0.0
  %776 = vmatpush1.msra.mxu0 0.0
  %777 = vmatprep.subr.mxu0 0.0
  %778 = vmatpush1.msra.mxu0 0.0
  %779 = vmatprep.subr.mxu0 0.0
  %780 = vmatpush1.msra.mxu0 0.0
  %781 = vmatprep.subr.mxu0 0.0
  %782 = vmatpush1.msra.mxu0 0.0
  %783 = vmatprep.subr.mxu0 0.0
  %784 = vmatpush1.msra.mxu0 0.0
  %785 = vmatprep.subr.mxu0 0.0
  %786 = vmatpush1.msra.mxu0 0.0
  %787 = vmatprep.subr.mxu0 0.0
  %788 = vmatpush1.msra.mxu0 0.0
  %789 = vmatprep.subr.mxu0 0.0
  %790 = vmatpush1.msra.mxu0 0.0
  %791 = vmatprep.mubr.f32.mxu0 0.0
  %792 = vmatmul.mubr.f32.gmra.mrb[0].mxu0 %v725
  %v793 = vpop.f32.mrb[0].mxu0
  %v794 = vadd.f32 0.0, %v793
  %v795 = vpop.f32.mrb[0].mxu0
  %796 = vdwg.mxu0
  %v797 = vmax.f32 %v794, 0.0
  %v798 = vadd.f32 %v797, %v646
  %v799 = vsel %vm179, %v723, 0.0
  %800 = vadd.xlane.f32.xlu0 %v799
  %v801 = vpop.xlane.xlu0 %800
  %v802 = vrot.slane %v801, 4
  %v803 = vadd.f32 %v801, %v802
  %v804 = vrot.slane %v803, 2
  %v805 = vadd.f32 %v803, %v804
  %v806 = vrot.slane %v805, 1
  %v807 = vadd.f32 %v805, %v806
  %s808 = vtos %v807
  %v809 = vrcp.pop 256.0
  %s810 = vtos %v809
  %s811 = smul.f32 %s808, %s810
  %v812 = vmul.f32 %v723, %v723
  %v813 = vsel %vm179, %v812, 0.0
  %814 = vadd.xlane.f32.xlu0 %v813
  %v815 = vpop.xlane.xlu0 %814
  %v816 = vrot.slane %v815, 4
  %v817 = vadd.f32 %v815, %v816
  %v818 = vrot.slane %v817, 2
  %v819 = vadd.f32 %v817, %v818
  %v820 = vrot.slane %v819, 1
  %v821 = vadd.f32 %v819, %v820
  %s822 = vtos %v821
  %v823 = vrcp.pop 256.0
  %s824 = vtos %v823
  %s825 = smul.f32 %s822, %s824
  %s826 = smul.f32 %s811, %s811
  %s827 = ssub.f32 %s825, %s826
  %v828 = vstv %s811
  %v829 = vsub.f32 %v723, %v828
  %s830 = sadd.f32 %s827, 1e-05
  %v831 = vstv %s830
  %v832 = vrsqrt.pop %v831
  %s833 = vtos %v832
  %v834 = vstv %s833
  %v835 = vmul.f32 %v829, %v834
  %v836 = vsel %vm179, %v798, 0.0
  %837 = vadd.xlane.f32.xlu0 %v836
  %v838 = vpop.xlane.xlu0 %837
  %v839 = vrot.slane %v838, 4
  %v840 = vadd.f32 %v838, %v839
  %v841 = vrot.slane %v840, 2
  %v842 = vadd.f32 %v840, %v841
  %v843 = vrot.slane %v842, 1
  %v844 = vadd.f32 %v842, %v843
  %s845 = vtos %v844
  %v846 = vrcp.pop 256.0
  %s847 = vtos %v846
  %s848 = smul.f32 %s845, %s847
  %v849 = vmul.f32 %v798, %v798
  %v850 = vsel %vm179, %v849, 0.0
  %851 = vadd.xlane.f32.xlu0 %v850
  %v852 = vpop.xlane.xlu0 %851
  %v853 = vrot.slane %v852, 4
  %v854 = vadd.f32 %v852, %v853
  %v855 = vrot.slane %v854, 2
  %v856 = vadd.f32 %v854, %v855
  %v857 = vrot.slane %v856, 1
  %v858 = vadd.f32 %v856, %v857
  %s859 = vtos %v858
  %v860 = vrcp.pop 256.0
  %s861 = vtos %v860
  %s862 = smul.f32 %s859, %s861
  %s863 = smul.f32 %s848, %s848
  %s864 = ssub.f32 %s862, %s863
  %v865 = vstv %s848
  %v866 = vsub.f32 %v798, %v865
  %s867 = sadd.f32 %s864, 1e-05
  %v868 = vstv %s867
  %v869 = vrsqrt.pop %v868
  %s870 = vtos %v869
  %v871 = vstv %s870
  %v872 = vmul.f32 %v866, %v871
  %873 = vst.msk [vmem:[#allocation2 + $0x50] sm:$0xff] %vm179, %v835
  %874 = vst.msk [vmem:[#allocation2 + $0x58] sm:$0xff] %vm179, %v872
  %v875 = vld [vmem:[%s1 + $0x40] sm:$0xff]
  %v876 = vld [vmem:[%s1 + $0x48] sm:$0xff]
  %v877 = vld [vmem:[%s1 + $0x50] sm:$0xff]
  %v878 = vld [vmem:[%s1 + $0x58] sm:$0xff]
  %v879 = vld [vmem:[#allocation2] sm:$0xff]
  %v880 = vld [vmem:[#allocation2 + $0x8] sm:$0xff]
  %v881 = vld [vmem:[#allocation2 + $0x10] sm:$0xff]
  %v882 = vld [vmem:[#allocation2 + $0x18] sm:$0xff]
  %v883 = vld [vmem:[#allocation2 + $0x20] sm:$0xff]
  %v884 = vld [vmem:[#allocation2 + $0x28] sm:$0xff]
  %v885 = vld [vmem:[#allocation2 + $0x30] sm:$0xff]
  %v886 = vld [vmem:[#allocation2 + $0x38] sm:$0xff]
  %v887 = vld [vmem:[#allocation2 + $0x40] sm:$0xff]
  %v888 = vld [vmem:[#allocation2 + $0x48] sm:$0xff]
  %v889 = vld [vmem:[#allocation2 + $0x50] sm:$0xff]
  %v890 = vld [vmem:[#allocation2 + $0x58] sm:$0xff]
  %v891 = vld [vmem:[#allocation2 + $0x60] sm:$0xff]
  %v893 = vsel %vm211, %v875, 0
  %v896 = vsel %vm211, %v876, 0
  %v899 = vsel %vm211, %v877, 0
  %v902 = vsel %vm211, %v878, 0
  %904 = vmatprep.subr.mxu0 0.0
  %905 = vmatpush1.msra.mxu0 %v879
  %906 = vmatprep.subr.mxu0 0.0
  %907 = vmatpush1.msra.mxu0 %v880
  %908 = vmatprep.subr.mxu0 0.0
  %909 = vmatpush1.msra.mxu0 %v881
  %910 = vmatprep.subr.mxu0 0.0
  %911 = vmatpush1.msra.mxu0 %v882
  %912 = vmatprep.subr.mxu0 0.0
  %913 = vmatpush1.msra.mxu0 %v883
  %914 = vmatprep.subr.mxu0 0.0
  %915 = vmatpush1.msra.mxu0 %v884
  %916 = vmatprep.subr.mxu0 0.0
  %917 = vmatpush1.msra.mxu0 %v885
  %918 = vmatprep.subr.mxu0 0.0
  %919 = vmatpush1.msra.mxu0 %v886
  %920 = vmatprep.subr.mxu0 0.0
  %921 = vmatpush1.msra.mxu0 %v887
  %922 = vmatprep.subr.mxu0 0.0
  %923 = vmatpush1.msra.mxu0 %v888
  %924 = vmatprep.subr.mxu0 0.0
  %925 = vmatpush1.msra.mxu0 %v889
  %926 = vmatprep.subr.mxu0 0.0
  %927 = vmatpush1.msra.mxu0 %v890
  %928 = vmatprep.subr.mxu0 0.0
  %929 = vmatpush1.msra.mxu0 %v891
  %930 = vmatprep.subr.mxu0 0.0
  %931 = vmatpush1.msra.mxu0 0.0
  %932 = vmatprep.subr.mxu0 0.0
  %933 = vmatpush1.msra.mxu0 0.0
  %934 = vmatprep.subr.mxu0 0.0
  %935 = vmatpush1.msra.mxu0 0.0
  %936 = vmatprep.subr.mxu0 0.0
  %937 = vmatpush1.msra.mxu0 0.0
  %938 = vmatprep.subr.mxu0 0.0
  %939 = vmatpush1.msra.mxu0 0.0
  %940 = vmatprep.subr.mxu0 0.0
  %941 = vmatpush1.msra.mxu0 0.0
  %942 = vmatprep.subr.mxu0 0.0
  %943 = vmatpush1.msra.mxu0 0.0
  %944 = vmatprep.subr.mxu0 0.0
  %945 = vmatpush1.msra.mxu0 0.0
  %946 = vmatprep.subr.mxu0 0.0
  %947 = vmatpush1.msra.mxu0 0.0
  %948 = vmatprep.subr.mxu0 0.0
  %949 = vmatpush1.msra.mxu0 0.0
  %950 = vmatprep.subr.mxu0 0.0
  %951 = vmatpush1.msra.mxu0 0.0
  %952 = vmatprep.subr.mxu0 0.0
  %953 = vmatpush1.msra.mxu0 0.0
  %954 = vmatprep.subr.mxu0 0.0
  %955 = vmatpush1.msra.mxu0 0.0
  %956 = vmatprep.subr.mxu0 0.0
  %957 = vmatpush1.msra.mxu0 0.0
  %958 = vmatprep.subr.mxu0 0.0
  %959 = vmatpush1.msra.mxu0 0.0
  %960 = vmatprep.subr.mxu0 0.0
  %961 = vmatpush1.msra.mxu0 0.0
  %962 = vmatprep.subr.mxu0 0.0
  %963 = vmatpush1.msra.mxu0 0.0
  %964 = vmatprep.subr.mxu0 0.0
  %965 = vmatpush1.msra.mxu0 0.0
  %966 = vmatprep.subr.mxu0 0.0
  %967 = vmatpush1.msra.mxu0 0.0
  %968 = vmatprep.mubr.f32.mxu0 0.0
  %969 = vmatmul.mubr.f32.gmra.mrb[0].mxu0 %v893
  %v970 = vpop.f32.mrb[0].mxu0
  %v971 = vadd.f32 0.0, %v970
  %v972 = vpop.f32.mrb[0].mxu0
  %973 = vmatprep.mubr.f32.mxu0 0.0
  %974 = vmatmul.mubr.f32.gmra.mrb[0].mxu0 %v896
  %v975 = vpop.f32.mrb[0].mxu0
  %v976 = vadd.f32 0.0, %v975
  %v977 = vpop.f32.mrb[0].mxu0
  %978 = vmatprep.mubr.f32.mxu0 0.0
  %979 = vmatmul.mubr.f32.gmra.mrb[0].mxu0 %v899
  %v980 = vpop.f32.mrb[0].mxu0
  %v981 = vadd.f32 0.0, %v980
  %v982 = vpop.f32.mrb[0].mxu0
  %983 = vmatprep.mubr.f32.mxu0 0.0
  %984 = vmatmul.mubr.f32.gmra.mrb[0].mxu0 %v902
  %v985 = vpop.f32.mrb[0].mxu0
  %v986 = vadd.f32 0.0, %v985
  %v987 = vpop.f32.mrb[0].mxu0
  %988 = vdwg.mxu0
  %v990 = vsel %vm179, %v971, 0
  %992 = vmatprep.subr.mxu0 0.0
  %993 = vmatpush1.msra.mxu0 %v15
  %994 = vmatprep.subr.mxu0 0.0
  %995 = vmatpush1.msra.mxu0 %v16
  %996 = vmatprep.subr.mxu0 0.0
  %997 = vmatpush1.msra.mxu0 %v17
  %998 = vmatprep.subr.mxu0 0.0
  %999 = vmatpush1.msra.mxu0 %v18
  %1000 = vmatprep.subr.mxu0 0.0
  %1001 = vmatpush1.msra.mxu0 0.0
  %1002 = vmatprep.subr.mxu0 0.0
  %1003 = vmatpush1.msra.mxu0 0.0
  %1004 = vmatprep.subr.mxu0 0.0
  %1005 = vmatpush1.msra.mxu0 0.0
  %1006 = vmatprep.subr.mxu0 0.0
  %1007 = vmatpush1.msra.mxu0 0.0
  %1008 = vmatprep.subr.mxu0 0.0
  %1009 = vmatpush1.msra.mxu0 0.0
  %1010 = vmatprep.subr.mxu0 0.0
  %1011 = vmatpush1.msra.mxu0 0.0
  %1012 = vmatprep.subr.mxu0 0.0
  %1013 = vmatpush1.msra.mxu0 0.0
  %1014 = vmatprep.subr.mxu0 0.0
  %1015 = vmatpush1.msra.mxu0 0.0
  %1016 = vmatprep.subr.mxu0 0.0
  %1017 = vmatpush1.msra.mxu0 0.0
  %1018 = vmatprep.subr.mxu0 0.0
  %1019 = vmatpush1.msra.mxu0 0.0
  %1020 = vmatprep.subr.mxu0 0.0
  %1021 = vmatpush1.msra.mxu0 0.0
  %1022 = vmatprep.subr.mxu0 0.0
  %1023 = vmatpush1.msra.mxu0 0.0
  %1024 = vmatprep.subr.mxu0 0.0
  %1025 = vmatpush1.msra.mxu0 0.0
  %1026 = vmatprep.subr.mxu0 0.0
  %1027 = vmatpush1.msra.mxu0 0.0
  %1028 = vmatprep.subr.mxu0 0.0
  %1029 = vmatpush1.msra.mxu0 0.0
  %1030 = vmatprep.subr.mxu0 0.0
  %1031 = vmatpush1.msra.mxu0 0.0
  %1032 = vmatprep.subr.mxu0 0.0
  %1033 = vmatpush1.msra.mxu0 0.0
  %1034 = vmatprep.subr.mxu0 0.0
  %1035 = vmatpush1.msra.mxu0 0.0
  %1036 = vmatprep.subr.mxu0 0.0
  %1037 = vmatpush1.msra.mxu0 0.0
  %1038 = vmatprep.subr.mxu0 0.0
  %1039 = vmatpush1.msra.mxu0 0.0
  %1040 = vmatprep.subr.mxu0 0.0
  %1041 = vmatpush1.msra.mxu0 0.0
  %1042 = vmatprep.subr.mxu0 0.0
  %1043 = vmatpush1.msra.mxu0 0.0
  %1044 = vmatprep.subr.mxu0 0.0
  %1045 = vmatpush1.msra.mxu0 0.0
  %1046 = vmatprep.subr.mxu0 0.0
  %1047 = vmatpush1.msra.mxu0 0.0
  %1048 = vmatprep.subr.mxu0 0.0
  %1049 = vmatpush1.msra.mxu0 0.0
  %1050 = vmatprep.subr.mxu0 0.0
  %1051 = vmatpush1.msra.mxu0 0.0
  %1052 = vmatprep.subr.mxu0 0.0
  %1053 = vmatpush1.msra.mxu0 0.0
  %1054 = vmatprep.subr.mxu0 0.0
  %1055 = vmatpush1.msra.mxu0 0.0
  %1056 = vmatprep.mubr.f32.mxu0 0.0
  %1057 = vmatmul.mubr.f32.gmra.mrb[0].mxu0 %v990
  %v1058 = vpop.f32.mrb[0].mxu0
  %v1059 = vadd.f32 0.0, %v1058
  %v1060 = vpop.f32.mrb[0].mxu0
  %1061 = vdwg.mxu0
  %v1062 = vmax.f32 %v1059, 0.0
  %v1063 = vadd.f32 %v1062, %v981
  %v1065 = vsel %vm179, %v976, 0
  %1067 = vmatprep.subr.mxu0 0.0
  %1068 = vmatpush1.msra.mxu0 %v19
  %1069 = vmatprep.subr.mxu0 0.0
  %1070 = vmatpush1.msra.mxu0 %v20
  %1071 = vmatprep.subr.mxu0 0.0
  %1072 = vmatpush1.msra.mxu0 %v21
  %1073 = vmatprep.subr.mxu0 0.0
  %1074 = vmatpush1.msra.mxu0 %v22
  %1075 = vmatprep.subr.mxu0 0.0
  %1076 = vmatpush1.msra.mxu0 0.0
  %1077 = vmatprep.subr.mxu0 0.0
  %1078 = vmatpush1.msra.mxu0 0.0
  %1079 = vmatprep.subr.mxu0 0.0
  %1080 = vmatpush1.msra.mxu0 0.0
  %1081 = vmatprep.subr.mxu0 0.0
  %1082 = vmatpush1.msra.mxu0 0.0
  %1083 = vmatprep.subr.mxu0 0.0
  %1084 = vmatpush1.msra.mxu0 0.0
  %1085 = vmatprep.subr.mxu0 0.0
  %1086 = vmatpush1.msra.mxu0 0.0
  %1087 = vmatprep.subr.mxu0 0.0
  %1088 = vmatpush1.msra.mxu0 0.0
  %1089 = vmatprep.subr.mxu0 0.0
  %1090 = vmatpush1.msra.mxu0 0.0
  %1091 = vmatprep.subr.mxu0 0.0
  %1092 = vmatpush1.msra.mxu0 0.0
  %1093 = vmatprep.subr.mxu0 0.0
  %1094 = vmatpush1.msra.mxu0 0.0
  %1095 = vmatprep.subr.mxu0 0.0
  %1096 = vmatpush1.msra.mxu0 0.0
  %1097 = vmatprep.subr.mxu0 0.0
  %1098 = vmatpush1.msra.mxu0 0.0
  %1099 = vmatprep.subr.mxu0 0.0
  %1100 = vmatpush1.msra.mxu0 0.0
  %1101 = vmatprep.subr.mxu0 0.0
  %1102 = vmatpush1.msra.mxu0 0.0
  %1103 = vmatprep.subr.mxu0 0.0
  %1104 = vmatpush1.msra.mxu0 0.0
  %1105 = vmatprep.subr.mxu0 0.0
  %1106 = vmatpush1.msra.mxu0 0.0
  %1107 = vmatprep.subr.mxu0 0.0
  %1108 = vmatpush1.msra.mxu0 0.0
  %1109 = vmatprep.subr.mxu0 0.0
  %1110 = vmatpush1.msra.mxu0 0.0
  %1111 = vmatprep.subr.mxu0 0.0
  %1112 = vmatpush1.msra.mxu0 0.0
  %1113 = vmatprep.subr.mxu0 0.0
  %1114 = vmatpush1.msra.mxu0 0.0
  %1115 = vmatprep.subr.mxu0 0.0
  %1116 = vmatpush1.msra.mxu0 0.0
  %1117 = vmatprep.subr.mxu0 0.0
  %1118 = vmatpush1.msra.mxu0 0.0
  %1119 = vmatprep.subr.mxu0 0.0
  %1120 = vmatpush1.msra.mxu0 0.0
  %1121 = vmatprep.subr.mxu0 0.0
  %1122 = vmatpush1.msra.mxu0 0.0
  %1123 = vmatprep.subr.mxu0 0.0
  %1124 = vmatpush1.msra.mxu0 0.0
  %1125 = vmatprep.subr.mxu0 0.0
  %1126 = vmatpush1.msra.mxu0 0.0
  %1127 = vmatprep.subr.mxu0 0.0
  %1128 = vmatpush1.msra.mxu0 0.0
  %1129 = vmatprep.subr.mxu0 0.0
  %1130 = vmatpush1.msra.mxu0 0.0
  %1131 = vmatprep.mubr.f32.mxu0 0.0
  %1132 = vmatmul.mubr.f32.gmra.mrb[0].mxu0 %v1065
  %v1133 = vpop.f32.mrb[0].mxu0
  %v1134 = vadd.f32 0.0, %v1133
  %v1135 = vpop.f32.mrb[0].mxu0
  %1136 = vdwg.mxu0
  %v1137 = vmax.f32 %v1134, 0.0
  %v1138 = vadd.f32 %v1137, %v986
  %v1139 = vsel %vm179, %v1063, 0.0
  %1140 = vadd.xlane.f32.xlu0 %v1139
  %v1141 = vpop.xlane.xlu0 %1140
  %v1142 = vrot.slane %v1141, 4
  %v1143 = vadd.f32 %v1141, %v1142
  %v1144 = vrot.slane %v1143, 2
  %v1145 = vadd.f32 %v1143, %v1144
  %v1146 = vrot.slane %v1145, 1
  %v1147 = vadd.f32 %v1145, %v1146
  %s1148 = vtos %v1147
  %v1149 = vrcp.pop 256.0
  %s1150 = vtos %v1149
  %s1151 = smul.f32 %s1148, %s1150
  %v1152 = vmul.f32 %v1063, %v1063
  %v1153 = vsel %vm179, %v1152, 0.0
  %1154 = vadd.xlane.f32.xlu0 %v1153
  %v1155 = vpop.xlane.xlu0 %1154
  %v1156 = vrot.slane %v1155, 4
  %v1157 = vadd.f32 %v1155, %v1156
  %v1158 = vrot.slane %v1157, 2
  %v1159 = vadd.f32 %v1157, %v1158
  %v1160 = vrot.slane %v1159, 1
  %v1161 = vadd.f32 %v1159, %v1160
  %s1162 = vtos %v1161
  %v1163 = vrcp.pop 256.0
  %s1164 = vtos %v1163
  %s1165 = smul.f32 %s1162, %s1164
  %s1166 = smul.f32 %s1151, %s1151
  %s1167 = ssub.f32 %s1165, %s1166
  %v1168 = vstv %s1151
  %v1169 = vsub.f32 %v1063, %v1168
  %s1170 = sadd.f32 %s1167, 1e-05
  %v1171 = vstv %s1170
  %v1172 = vrsqrt.pop %v1171
  %s1173 = vtos %v1172
  %v1174 = vstv %s1173
  %v1175 = vmul.f32 %v1169, %v1174
  %v1176 = vsel %vm179, %v1138, 0.0
  %1177 = vadd.xlane.f32.xlu0 %v1176
  %v1178 = vpop.xlane.xlu0 %1177
  %v1179 = vrot.slane %v1178, 4
  %v1180 = vadd.f32 %v1178, %v1179
  %v1181 = vrot.slane %v1180, 2
  %v1182 = vadd.f32 %v1180, %v1181
  %v1183 = vrot.slane %v1182, 1
  %v1184 = vadd.f32 %v1182, %v1183
  %s1185 = vtos %v1184
  %v1186 = vrcp.pop 256.0
  %s1187 = vtos %v1186
  %s1188 = smul.f32 %s1185, %s1187
  %v1189 = vmul.f32 %v1138, %v1138
  %v1190 = vsel %vm179, %v1189, 0.0
  %1191 = vadd.xlane.f32.xlu0 %v1190
  %v1192 = vpop.xlane.xlu0 %1191
  %v1193 = vrot.slane %v1192, 4
  %v1194 = vadd.f32 %v1192, %v1193
  %v1195 = vrot.slane %v1194, 2
  %v1196 = vadd.f32 %v1194, %v1195
  %v1197 = vrot.slane %v1196, 1
  %v1198 = vadd.f32 %v1196, %v1197
  %s1199 = vtos %v1198
  %v1200 = vrcp.pop 256.0
  %s1201 = vtos %v1200
  %s1202 = smul.f32 %s1199, %s1201
  %s1203 = smul.f32 %s1188, %s1188
  %s1204 = ssub.f32 %s1202, %s1203
  %v1205 = vstv %s1188
  %v1206 = vsub.f32 %v1138, %v1205
  %s1207 = sadd.f32 %s1204, 1e-05
  %v1208 = vstv %s1207
  %v1209 = vrsqrt.pop %v1208
  %s1210 = vtos %v1209
  %v1211 = vstv %s1210
  %v1212 = vmul.f32 %v1206, %v1211
  %1213 = vst.msk [vmem:[%s3] sm:$0xff] %vm179, %v1175
  %1214 = vst.msk [vmem:[%s3 + $0x8] sm:$0xff] %vm179, %v1212
  // Predicated region
  $region14: #{forward.1} parent=0 // pred_check
    _
  $region15: #{forward.1} parent=0 // pred_check_branch
    %1216 = sbr.rel (0) target = $region17
  $region16: #{forward.1} parent=0 // pred_region
    _
  $region17: #{forward.1} parent=0 // pred_fallthru
    _
  // Predicated region
  $region18: #{forward.1} parent=0 // pred_check
    _
  $region19: #{forward.1} parent=0 // pred_check_branch
    %1218 = sbr.rel (0) target = $region21
  $region20: #{forward.1} parent=0 // pred_region
    _
  $region21: #{forward.1} parent=0 // pred_fallthru
    _

</llo_original>
